<compile_context>
chip_gen: v6e
topology: v6e:2x2x1
jax: 0.10.0
libtpu: 0.0.40
codegen_flags: <defaults>
</compile_context>

<pallas_src>
import jax
import jax.numpy as jnp
from jax.experimental import pallas as pl
from jax.experimental.pallas import tpu as pltpu


# ----------------------------- kernel ----------------------------------------


def _gcn_fused_kernel(adj_ref, seq_ref, w_ref, bias_ref, alpha_ref, out_ref):
    k = pl.program_id(1)

    @pl.when(k == 0)
    def _():
        # Resident f32 output tile: initialize with the broadcast bias.
        out_ref[...] = jnp.broadcast_to(bias_ref[...], out_ref.shape)

    # Recompute the seq_fts K-tile in-kernel (W is resident & tiny) ...
    fts = jnp.dot(
        seq_ref[...], w_ref[...], preferred_element_type=jnp.float32
    ).astype(jnp.bfloat16)
    # ... then the partial adj contraction for this (row, K) tile, f32 accum.
    out_ref[...] += jnp.dot(
        adj_ref[...].astype(jnp.bfloat16), fts,
        preferred_element_type=jnp.float32,
    )

    @pl.when(k == pl.num_programs(1) - 1)
    def _():
        z = out_ref[...]
        alpha = alpha_ref[0, 0]                 # PReLU slope (scalar in SMEM)
        out_ref[...] = jnp.where(z > 0, z, alpha * z)


# ----------------------------- wrapper ----------------------------------------


def _round_up(x, m):
    return (x + m - 1) // m * m


def _pad2(x, rows, cols):
    pr, pc = rows - x.shape[0], cols - x.shape[1]
    if pr == 0 and pc == 0:
        return x
    return jnp.pad(x, ((0, pr), (0, pc)))


def _choose_tiles(Np, max_tm=512, max_tk=2048):
    """Pick (tile_m, tile_k) as multiples of 256 that divide Np."""
    cands = [t for t in range(256, Np + 1, 256) if Np % t == 0]
    tm_c = [t for t in cands if t <= max_tm]
    tm_pref = [t for t in tm_c if Np // t >= 2]   # keep >=2 row tiles (v7x: 2 TCs)
    tile_m = max(tm_pref) if tm_pref else max(tm_c)
    tile_k = max(t for t in cands if t <= max_tk)
    return tile_m, tile_k


def gcn_forward(seq, adj, weight, bias, prelu_alpha):
    """seq: (N, in_ft) f32, adj: (N, N) f32, weight: (out_ft, in_ft) f32,
       bias: (out_ft,) f32, prelu_alpha: scalar.  Returns (N, out_ft) f32."""
    N, in_ft = seq.shape
    out_ft = weight.shape[0]
    assert adj.shape == (N, N)

    Np = _round_up(N, 256)            # node dim: decoupled from tile_k
    Fp = _round_up(out_ft, 128)       # lane-dense output features
    in_ft_p = _round_up(in_ft, 128)   # lane-full MXU K for the fused linear

    tile_m, tile_k = _choose_tiles(Np)

    # Small operands: pad + cast wrapper-side (O(N * in_ft), negligible).
    seq_p = _pad2(seq, Np, in_ft_p).astype(jnp.bfloat16)       # (Np, in_ft_p)
    w_p = _pad2(weight.T, in_ft_p, Fp).astype(jnp.bfloat16)    # (in_ft_p, Fp)
    bias_p = jnp.pad(bias.astype(jnp.float32), (0, Fp - out_ft)).reshape(1, Fp)
    alpha2d = jnp.asarray(prelu_alpha, jnp.float32).reshape(1, 1)

    # adj (the N^2 operand): avoid any wrapper-side HBM pass when possible.
    if Np == N:
        adj_p = adj                                        # cast per-tile in-kernel
    else:
        adj_p = _pad2(adj.astype(jnp.bfloat16), Np, Np)    # single pad+cast pass

    adj_item = jnp.dtype(adj_p.dtype).itemsize
    n_row = Np // tile_m
    n_k = Np // tile_k

    # VMEM budget from the actual plan: double-buffered streams + resident W.
    vmem_plan = (
        2 * tile_m * tile_k * adj_item     # adj tiles (double-buffered)
        + 2 * tile_k * in_ft_p * 2         # seq tiles (bf16, double-buffered)
        + in_ft_p * Fp * 2                 # resident W (bf16)
        + 2 * Fp * 4                       # bias
        + 2 * tile_m * Fp * 4              # resident/revisited f32 output tile
    )
    vmem_limit = int(min(max(2 * vmem_plan, 16 << 20), 96 << 20))

    flops = 2 * Np * Np * Fp + 2 * n_row * Np * in_ft_p * Fp   # adj mm + fused fts
    bytes_accessed = (
        Np * Np * adj_item                 # adj streamed once
        + n_row * Np * in_ft_p * 2         # seq re-read once per row tile
        + in_ft_p * Fp * 2 + Fp * 4        # W + bias
        + Np * Fp * 4                      # f32 output
    )

    out = pl.pallas_call(
        _gcn_fused_kernel,
        out_shape=jax.ShapeDtypeStruct((Np, Fp), jnp.float32),
        grid_spec=pltpu.PrefetchScalarGridSpec(
            num_scalar_prefetch=0,
            grid=(n_row, n_k),
            in_specs=[
                pl.BlockSpec((tile_m, tile_k), lambda i, k: (i, k)),    # adj tile
                pl.BlockSpec((tile_k, in_ft_p), lambda i, k: (k, 0)),   # seq K-tile
                pl.BlockSpec((in_ft_p, Fp), lambda i, k: (0, 0)),       # W (resident)
                pl.BlockSpec((1, Fp), lambda i, k: (0, 0)),             # bias
                pl.BlockSpec((1, 1), lambda i, k: (0, 0),
                             memory_space=pltpu.MemorySpace.SMEM),      # PReLU alpha
            ],
            out_specs=pl.BlockSpec((tile_m, Fp), lambda i, k: (i, 0)),
        ),
        compiler_params=pltpu.CompilerParams(
            dimension_semantics=("parallel", "arbitrary"),
            vmem_limit_bytes=vmem_limit,
        ),
        cost_estimate=pl.CostEstimate(
            flops=int(flops),
            transcendentals=0,
            bytes_accessed=int(bytes_accessed),
        ),
    )(adj_p, seq_p, w_p, bias_p, alpha2d)

    return out[:N, :out_ft]


# ----------------------------- test -------------------------------------------


if __name__ == "__main__":
    # Small shapes consistent with the module's forward: N nodes, in_ft -> out_ft.
    N, in_ft, out_ft = 512, 64, 128
    key = jax.random.PRNGKey(0)
    k_seq, k_adj, k_w = jax.random.split(key, 3)

    seq = jax.random.normal(k_seq, (N, in_ft), jnp.float32)
    # symmetric, row-normalized-ish dense adjacency
    a = jax.random.uniform(k_adj, (N, N), jnp.float32)
    adj = (a + a.T) / (2.0 * N)

    # nn.Linear weight (out_ft, in_ft), xavier_uniform init; bias filled with 0.
    bound = float(jnp.sqrt(6.0 / (in_ft + out_ft)))
    weight = jax.random.uniform(k_w, (out_ft, in_ft), jnp.float32,
                                minval=-bound, maxval=bound)
    bias = jnp.zeros((out_ft,), jnp.float32)
    prelu_alpha = jnp.float32(0.25)                # nn.PReLU default init

    out = gcn_forward(seq, adj, weight, bias, prelu_alpha)
    out = jax.block_until_ready(out)

    # Pure-JAX reference emulating the kernel's bf16 input/intermediate rounding.
    fts_ref = jnp.dot(seq.astype(jnp.bfloat16), weight.astype(jnp.bfloat16).T,
                      preferred_element_type=jnp.float32).astype(jnp.bfloat16)
    ref = jnp.dot(adj.astype(jnp.bfloat16), fts_ref,
                  preferred_element_type=jnp.float32) + bias[None, :]
    ref = jnp.where(ref > 0, ref, prelu_alpha * ref)

    assert out.shape == (N, out_ft)
    assert jnp.allclose(out, ref, atol=1e-2, rtol=2e-2), "mismatch vs reference"

    # TODO(synk): sparse=True path (torch.spmm on a sparse adj) and the optional
    # BatchNorm1d (Nor=True) branch are not implemented; dense default path only.
    print("KERNEL_OK")
</pallas_src>

<mosaic_0001>
module attributes {stable_mosaic.version = 11 : i64} {
  func.func @_gcn_fused_kernel(%arg0: i32, %arg1: i32, %arg2: memref<256x512xf32, #tpu.memory_space<vmem>>, %arg3: memref<512x128xbf16, #tpu.memory_space<vmem>>, %arg4: memref<128x128xbf16, #tpu.memory_space<vmem>>, %arg5: memref<1x128xf32, #tpu.memory_space<vmem>>, %arg6: memref<1x1xf32, #tpu.memory_space<smem>>, %arg7: memref<256x128xf32, #tpu.memory_space<vmem>>) attributes {dimension_semantics = [#tpu.dimension_semantics<parallel>, #tpu.dimension_semantics<arbitrary>], iteration_bounds = array<i64: 2, 1>, scalar_prefetch = 0 : i64, scratch_operands = 0 : i64, tpu.core_type = #tpu.core_type<tc>, window_params = [{transform_indices = @transform_0, window_bounds = array<i64: 256, 512>}, {transform_indices = @transform_1, window_bounds = array<i64: 512, 128>}, {pipeline_mode = #tpu.pipeline_mode<synchronous>, transform_indices = @transform_2, window_bounds = array<i64: 128, 128>}, {pipeline_mode = #tpu.pipeline_mode<synchronous>, transform_indices = @transform_3, window_bounds = array<i64: 1, 128>}, {transform_indices = @transform_4, window_bounds = array<i64: 1, 1>}, {transform_indices = @transform_5, window_bounds = array<i64: 256, 128>}]} {
    %c0_i32 = arith.constant 0 : i32
    %0 = arith.cmpi eq, %arg1, %c0_i32 : i32
    %1 = arith.extui %0 : i1 to i32
    %c0_i32_0 = arith.constant 0 : i32
    %2 = arith.cmpi ne, %1, %c0_i32_0 : i32
    scf.if %2 {
      %c0_13 = arith.constant 0 : index
      %c0_14 = arith.constant 0 : index
      %16 = vector.load %arg5[%c0_13, %c0_14] : memref<1x128xf32, #tpu.memory_space<vmem>>, vector<1x128xf32>
      %17 = vector.shape_cast %16 : vector<1x128xf32> to vector<1x128xf32>
      %18 = vector.broadcast %17 : vector<1x128xf32> to vector<256x128xf32>
      %c0_15 = arith.constant 0 : index
      %c0_16 = arith.constant 0 : index
      %19 = vector.load %arg7[%c0_15, %c0_16] : memref<256x128xf32, #tpu.memory_space<vmem>>, vector<256x128xf32>
      tpu.vector_store %arg7[%c0_15, %c0_16], %18 {strides = array<i32>} : memref<256x128xf32, #tpu.memory_space<vmem>>, vector<256x128xf32>,
    } else {
    }
    %c0 = arith.constant 0 : index
    %c0_1 = arith.constant 0 : index
    %3 = vector.load %arg3[%c0, %c0_1] : memref<512x128xbf16, #tpu.memory_space<vmem>>, vector<512x128xbf16>
    %c0_2 = arith.constant 0 : index
    %c0_3 = arith.constant 0 : index
    %4 = vector.load %arg4[%c0_2, %c0_3] : memref<128x128xbf16, #tpu.memory_space<vmem>>, vector<128x128xbf16>
    %cst = arith.constant dense<0.000000e+00> : vector<512x128xf32>
    %5 = tpu.matmul %3, %4, %cst {dimension_numbers = #tpu.dot_dimension_numbers<[1], [0], [0], [1], [0, 0, 1, 1], [], []>} : vector<512x128xbf16>, vector<128x128xbf16>, vector<512x128xf32> -> vector<512x128xf32>
    %6 = arith.truncf %5 : vector<512x128xf32> to vector<512x128xbf16>
    %c0_4 = arith.constant 0 : index
    %c0_5 = arith.constant 0 : index
    %7 = vector.load %arg7[%c0_4, %c0_5] : memref<256x128xf32, #tpu.memory_space<vmem>>, vector<256x128xf32>
    %c0_6 = arith.constant 0 : index
    %c0_7 = arith.constant 0 : index
    %8 = vector.load %arg2[%c0_6, %c0_7] : memref<256x512xf32, #tpu.memory_space<vmem>>, vector<256x512xf32>
    %9 = arith.truncf %8 : vector<256x512xf32> to vector<256x512xbf16>
    %cst_8 = arith.constant dense<0.000000e+00> : vector<256x128xf32>
    %10 = tpu.matmul %9, %6, %cst_8 {dimension_numbers = #tpu.dot_dimension_numbers<[1], [0], [0], [1], [0, 0, 1, 1], [], []>} : vector<256x512xbf16>, vector<512x128xbf16>, vector<256x128xf32> -> vector<256x128xf32>
    %11 = arith.addf %7, %10 : vector<256x128xf32>
    %c0_9 = arith.constant 0 : index
    %c0_10 = arith.constant 0 : index
    %12 = vector.load %arg7[%c0_9, %c0_10] : memref<256x128xf32, #tpu.memory_space<vmem>>, vector<256x128xf32>
    tpu.vector_store %arg7[%c0_9, %c0_10], %11 {strides = array<i32>} : memref<256x128xf32, #tpu.memory_space<vmem>>, vector<256x128xf32>,
    %c0_i32_11 = arith.constant 0 : i32
    %13 = arith.cmpi eq, %arg1, %c0_i32_11 : i32
    %14 = arith.extui %13 : i1 to i32
    %c0_i32_12 = arith.constant 0 : i32
    %15 = arith.cmpi ne, %14, %c0_i32_12 : i32
    scf.if %15 {
      %c0_13 = arith.constant 0 : index
      %c0_14 = arith.constant 0 : index
      %16 = vector.load %arg7[%c0_13, %c0_14] : memref<256x128xf32, #tpu.memory_space<vmem>>, vector<256x128xf32>
      %c0_15 = arith.constant 0 : index
      %c0_16 = arith.constant 0 : index
      %17 = memref.load %arg6[%c0_15, %c0_16] : memref<1x1xf32, #tpu.memory_space<smem>>
      %cst_17 = arith.constant 0.000000e+00 : f32
      %18 = vector.broadcast %cst_17 : f32 to vector<256x128xf32>
      %19 = arith.cmpf ogt, %16, %18 : vector<256x128xf32>
      %20 = vector.broadcast %17 : f32 to vector<256x128xf32>
      %21 = arith.mulf %20, %16 : vector<256x128xf32>
      %22 = arith.select %19, %16, %21 : vector<256x128xi1>, vector<256x128xf32>
      %c0_18 = arith.constant 0 : index
      %c0_19 = arith.constant 0 : index
      %23 = vector.load %arg7[%c0_18, %c0_19] : memref<256x128xf32, #tpu.memory_space<vmem>>, vector<256x128xf32>
      tpu.vector_store %arg7[%c0_18, %c0_19], %22 {strides = array<i32>} : memref<256x128xf32, #tpu.memory_space<vmem>>, vector<256x128xf32>,
    } else {
    }
    return
  }
  func.func @transform_0(%arg0: i32, %arg1: i32) -> (i32, i32) {
    %c0_i32 = arith.constant 0 : i32
    return %arg0, %arg1 : i32, i32
  }
  func.func @transform_1(%arg0: i32, %arg1: i32) -> (i32, i32) {
    %c0_i32 = arith.constant 0 : i32
    %c0_i32_0 = arith.constant 0 : i32
    return %arg1, %c0_i32 : i32, i32
  }
  func.func @transform_2(%arg0: i32, %arg1: i32) -> (i32, i32) {
    %c0_i32 = arith.constant 0 : i32
    %c0_i32_0 = arith.constant 0 : i32
    %c0_i32_1 = arith.constant 0 : i32
    return %c0_i32, %c0_i32_0 : i32, i32
  }
  func.func @transform_3(%arg0: i32, %arg1: i32) -> (i32, i32) {
    %c0_i32 = arith.constant 0 : i32
    %c0_i32_0 = arith.constant 0 : i32
    %c0_i32_1 = arith.constant 0 : i32
    return %c0_i32, %c0_i32_0 : i32, i32
  }
  func.func @transform_4(%arg0: i32, %arg1: i32) -> (i32, i32) {
    %c0_i32 = arith.constant 0 : i32
    %c0_i32_0 = arith.constant 0 : i32
    %c0_i32_1 = arith.constant 0 : i32
    return %c0_i32, %c0_i32_0 : i32, i32
  }
  func.func @transform_5(%arg0: i32, %arg1: i32) -> (i32, i32) {
    %c0_i32 = arith.constant 0 : i32
    %c0_i32_0 = arith.constant 0 : i32
    return %arg0, %c0_i32 : i32, i32
  }
}

</mosaic_0001>

<llo_original>
// kernel: tpu_custom_call.1
$region0: #{tpu_custom_call.1}
  #allocation0 [shape = 'u32[]', space=smem, size = 0x4, offset = 0x4, fixed_abs, tag = 'smem constant byte address 0x4 - core index']
  #allocation1 [shape = 'u32[144,128]{1,0:T(1,128)}', space=vmem, size = 0x12000, scoped, tag = 'internal scratch']
  #allocation2 [shape = 'f32[1,1]{1,0:T(1,128)S(6)}', space=smem, size = 0x200, scoped, tag = 'scoped memory for tpu_custom_call.1']
  %s0 = inlined_call_operand.hbm [shape: f32[512,512], index: 0, kind: input, shape index: {}]
  %s1 = inlined_call_operand.hbm [shape: bf16[512,128], index: 1, kind: input, shape index: {}]
  %s2 = inlined_call_operand.hbm [shape: bf16[128,128], index: 2, kind: input, shape index: {}]
  %s3 = inlined_call_operand.vmem [shape: f32[1,128], index: 3, kind: input, shape index: {}]
  %s4 = inlined_call_operand.<no memory space> [shape: f32[1,1], index: 4, kind: input, shape index: {}]
  %s5 = inlined_call_operand.hbm [shape: f32[512,128], index: 5, kind: output, shape index: {}]
  %s6 = sld [smem:[#allocation0]]
  $region73: #{tpu_custom_call.1} parent=0
    _
  %s8 = ssub.s32 1, %s6
  %s9 = scalar_select 0, %s8, %s6
  %10 = sst [smem:[#allocation2]] %s4
  $region1: #{tpu_custom_call.1} parent=0
    #allocation3 [shape = 'u8[1048576]{0}', space=vmem, size = 0x100000, scoped, tag = 'input window, operand 0']
    #allocation4 [shape = 's32[2]{0}', space=sflag, size = 0x8, scoped, tag = 'scoped memory for tpu_custom_call.1']
    #allocation5 [shape = 's32[2]{0}', space=sflag, size = 0x8, scoped, tag = 'scoped memory for tpu_custom_call.1']
    #allocation6 [shape = 'u8[131072]{0}', space=vmem, size = 0x20000, scoped, tag = 'input window, operand 1, single buffered']
    #allocation7 [shape = 's32[1]{0}', space=sflag, size = 0x4, scoped, tag = 'scoped memory for tpu_custom_call.1']
    #allocation8 [shape = 'u8[32768]{0}', space=vmem, size = 0x8000, scoped, tag = 'input window, operand 2, single buffered']
    #allocation9 [shape = 'u8[262144]{0}', space=vmem, size = 0x40000, scoped, tag = 'output window, operand 0']
    %11 = vsyncpa [#allocation4], 0
    %s12 = scalar_lea.sflag [#allocation4], 1
    %13 = vsyncpa %s12, 0
    %14 = vsyncpa [#allocation7], 0
    %15 = vsyncpa [#allocation5], 0
    %s16 = scalar_lea.sflag [#allocation5], 1
    %17 = vsyncpa %s16, 0
    loop: start=0, step=1, limit=4
    $region2: #{tpu_custom_call.1} parent=1 // loop_pre_header
      _
    $region3: #{tpu_custom_call.1} parent=1 // loop_header
      %s19 = sphi 0, %s23
      %p20 = scmp.ge.s32.totalorder %s19, 4
      %s26 = sphi 0, %s38
      %s27 = sphi 0, %s34
      %s28 = sphi 0, %s26
      %s29 = sphi 0, %s27
      %s30 = sphi 0, %s28
      %s31 = sphi 0, %s29
      %s43 = sphi 0, %s45
      %s46 = sphi 0, %s43
      %s47 = sphi 0, %s46
      %s63 = sphi 0, %s47
      %s69 = sphi 0, %s71
      %s72 = sphi 0, %s69
      %s73 = sphi 0, %s72
      %s89 = sphi 0, %s73
      %s93 = sphi 0, %s93
      %s95 = sphi 0, %s93
      %s96 = sphi 0, %s95
      %s110 = sphi 0, %s96
      %s114 = sphi 0, %s114
      %s116 = sphi 0, %s114
      %s117 = sphi 0, %s116
      %s131 = sphi 0, %s117
      %s135 = sphi 0, %s135
      %s137 = sphi 0, %s135
      %s138 = sphi 0, %s137
      %s152 = sphi 0, %s138
      %s158 = sphi 0, %s160
      %s161 = sphi 0, %s158
      %s162 = sphi 0, %s161
      %s178 = sphi 0, %s162
    $region4: #{tpu_custom_call.1} parent=1 // loop_header_branch
      %22 = sbr.rel (%p20) target = $region8
    $region5: #{tpu_custom_call.1} parent=1 // loop_body
      %s24 = ssub.s32 %s19, 1
      %s25 = ssub.s32 %s19, 2
      %s32 = sadd.s32 1, %s27
      %p33 = scmp.ge.s32.totalorder %s32, 1
      %s34 = scalar_select %p33, 0, %s32
      %s35 = sadd.s32 1, %s26
      %s36 = scalar_select %p33, %s35, %s26
      %p37 = scmp.ge.s32.totalorder %s36, 2
      %s38 = scalar_select %p37, 0, %s36
      %s39 = ssub.s32 %s26, %s38
      %s40 = ssub.s32 %s27, %s34
      %s41 = sor.u32 %s39, %s40
      %p42 = scmp.eq.s32.totalorder %s41, 0
      %s44 = sadd.s32 %s43, 1
      %s45 = scalar_select %p42, %s43, %s44
      %p48 = pneg %p42
      %p49 = scmp.eq.s32.totalorder %s19, 1
      %p50 = por %p48, %p49
      %p51 = scmp.ne.s32.totalorder %s43, %s46
      %p52 = scmp.eq.s32.totalorder %s19, 0
      %p53 = por %p51, %p52
      %p54 = scmp.ne.s32.totalorder %s43, %s46
      %p55 = scmp.eq.s32.totalorder %s24, 1
      %p56 = por %p54, %p55
      %p57 = scmp.ne.s32.totalorder %s46, %s47
      %p58 = scmp.eq.s32.totalorder %s24, 0
      %p59 = por %p57, %p58
      %p60 = scmp.ne.s32.totalorder %s46, %s47
      %p61 = scmp.eq.s32.totalorder %s25, 1
      %p62 = por %p60, %p61
      %p64 = scmp.ne.s32.totalorder %s47, %s63
      %p65 = scmp.eq.s32.totalorder %s25, 0
      %p66 = por %p64, %p65
      %s67 = ssub.s32 %s27, %s34
      %p68 = scmp.eq.s32.totalorder %s67, 0
      %s70 = sadd.s32 %s69, 1
      %s71 = scalar_select %p68, %s69, %s70
      %p74 = pneg %p68
      %p75 = scmp.eq.s32.totalorder %s19, 1
      %p76 = por %p74, %p75
      %p77 = scmp.ne.s32.totalorder %s69, %s72
      %p78 = scmp.eq.s32.totalorder %s19, 0
      %p79 = por %p77, %p78
      %p80 = scmp.ne.s32.totalorder %s69, %s72
      %p81 = scmp.eq.s32.totalorder %s24, 1
      %p82 = por %p80, %p81
      %p83 = scmp.ne.s32.totalorder %s72, %s73
      %p84 = scmp.eq.s32.totalorder %s24, 0
      %p85 = por %p83, %p84
      %p86 = scmp.ne.s32.totalorder %s72, %s73
      %p87 = scmp.eq.s32.totalorder %s25, 1
      %p88 = por %p86, %p87
      %p90 = scmp.ne.s32.totalorder %s73, %s89
      %p91 = scmp.eq.s32.totalorder %s25, 0
      %p92 = por %p90, %p91
      %s94 = sadd.s32 %s93, 1
      %p97 = scmp.eq.s32.totalorder %s19, 1
      %p98 = scmp.ne.s32.totalorder %s93, %s95
      %p99 = scmp.eq.s32.totalorder %s19, 0
      %p100 = por %p98, %p99
      %p101 = scmp.ne.s32.totalorder %s93, %s95
      %p102 = scmp.eq.s32.totalorder %s24, 1
      %p103 = por %p101, %p102
      %p104 = scmp.ne.s32.totalorder %s95, %s96
      %p105 = scmp.eq.s32.totalorder %s24, 0
      %p106 = por %p104, %p105
      %p107 = scmp.ne.s32.totalorder %s95, %s96
      %p108 = scmp.eq.s32.totalorder %s25, 1
      %p109 = por %p107, %p108
      %p111 = scmp.ne.s32.totalorder %s96, %s110
      %p112 = scmp.eq.s32.totalorder %s25, 0
      %p113 = por %p111, %p112
      %s115 = sadd.s32 %s114, 1
      %p118 = scmp.eq.s32.totalorder %s19, 1
      %p119 = scmp.ne.s32.totalorder %s114, %s116
      %p120 = scmp.eq.s32.totalorder %s19, 0
      %p121 = por %p119, %p120
      %p122 = scmp.ne.s32.totalorder %s114, %s116
      %p123 = scmp.eq.s32.totalorder %s24, 1
      %p124 = por %p122, %p123
      %p125 = scmp.ne.s32.totalorder %s116, %s117
      %p126 = scmp.eq.s32.totalorder %s24, 0
      %p127 = por %p125, %p126
      %p128 = scmp.ne.s32.totalorder %s116, %s117
      %p129 = scmp.eq.s32.totalorder %s25, 1
      %p130 = por %p128, %p129
      %p132 = scmp.ne.s32.totalorder %s117, %s131
      %p133 = scmp.eq.s32.totalorder %s25, 0
      %p134 = por %p132, %p133
      %s136 = sadd.s32 %s135, 1
      %p139 = scmp.eq.s32.totalorder %s19, 1
      %p140 = scmp.ne.s32.totalorder %s135, %s137
      %p141 = scmp.eq.s32.totalorder %s19, 0
      %p142 = por %p140, %p141
      %p143 = scmp.ne.s32.totalorder %s135, %s137
      %p144 = scmp.eq.s32.totalorder %s24, 1
      %p145 = por %p143, %p144
      %p146 = scmp.ne.s32.totalorder %s137, %s138
      %p147 = scmp.eq.s32.totalorder %s24, 0
      %p148 = por %p146, %p147
      %p149 = scmp.ne.s32.totalorder %s137, %s138
      %p150 = scmp.eq.s32.totalorder %s25, 1
      %p151 = por %p149, %p150
      %p153 = scmp.ne.s32.totalorder %s138, %s152
      %p154 = scmp.eq.s32.totalorder %s25, 0
      %p155 = por %p153, %p154
      %s156 = ssub.s32 %s26, %s38
      %p157 = scmp.eq.s32.totalorder %s156, 0
      %s159 = sadd.s32 %s158, 1
      %s160 = scalar_select %p157, %s158, %s159
      %p163 = pneg %p157
      %p164 = scmp.eq.s32.totalorder %s19, 1
      %p165 = por %p163, %p164
      %p166 = scmp.ne.s32.totalorder %s158, %s161
      %p167 = scmp.eq.s32.totalorder %s19, 0
      %p168 = por %p166, %p167
      %p169 = scmp.ne.s32.totalorder %s158, %s161
      %p170 = scmp.eq.s32.totalorder %s24, 1
      %p171 = por %p169, %p170
      %p172 = scmp.ne.s32.totalorder %s161, %s162
      %p173 = scmp.eq.s32.totalorder %s24, 0
      %p174 = por %p172, %p173
      %p175 = scmp.ne.s32.totalorder %s161, %s162
      %p176 = scmp.eq.s32.totalorder %s25, 1
      %p177 = por %p175, %p176
      %p179 = scmp.ne.s32.totalorder %s162, %s178
      %p180 = scmp.eq.s32.totalorder %s25, 0
      %p181 = por %p179, %p180
      %p182 = scmp.le.s32.totalorder 1, %s19
      %p183 = scmp.lt.s32.totalorder %s19, 3
      %p184 = pnand %p182, %p183
      %p185 = pneg %p184
      // Predicated region
      $region9: #{tpu_custom_call.1} parent=5 // pred_check
        _
      $region10: #{tpu_custom_call.1} parent=5 // pred_check_branch
        %187 = sbr.rel (%p184) target = $region12
      $region11: #{tpu_custom_call.1} parent=5 // pred_region
        %s188 = ssub.s32 %s19, 1
        // Predicated region
        $region13: #{tpu_custom_call.1} parent=11 // pred_check
          %p189 = pneg %p85
        $region14: #{tpu_custom_call.1} parent=11 // pred_check_branch
          %191 = sbr.rel (%p189) target = $region16
        $region15: #{tpu_custom_call.1} parent=11 // pred_region
          %s192 = smul.u32 64, %s29
          %s194 = ssub.s32 4096, 4096
          %195 = vsyncadd [#allocation7], %s194
          %s196 = smul.addr %s192, 64
          %s197 = scalar_lea.hbm %s1, %s196
          %s198 = sshll.u32 [#allocation6], 4
          %s199 = int_to_ptr.vmem [resolvable:$true] %s198
          %204 = dma.hbm_to_vmem [thread:$0]  %s197, 4096, %s199, [#allocation7], 64, 64, 4
        $region16: #{tpu_custom_call.1} parent=11 // pred_fallthru
          _
        // Predicated region
        $region17: #{tpu_custom_call.1} parent=11 // pred_check
          %p205 = pneg %p106
        $region18: #{tpu_custom_call.1} parent=11 // pred_check_branch
          %207 = sbr.rel (%p205) target = $region20
        $region19: #{tpu_custom_call.1} parent=11 // pred_region
          %s209 = ssub.s32 1024, 1024
          %210 = vsyncadd [#allocation7], %s209
          %s211 = sshll.u32 [#allocation8], 4
          %s212 = int_to_ptr.vmem [resolvable:$true] %s211
          %217 = dma.hbm_to_vmem [thread:$0]  %s2, 1024, %s212, [#allocation7], 64, 64, 4
        $region20: #{tpu_custom_call.1} parent=11 // pred_fallthru
          _
        // Predicated region
        $region21: #{tpu_custom_call.1} parent=11 // pred_check
          %p218 = pneg %p127
        $region22: #{tpu_custom_call.1} parent=11 // pred_check_branch
          %220 = sbr.rel (%p218) target = $region24
        $region23: #{tpu_custom_call.1} parent=11 // pred_region
          _
        $region24: #{tpu_custom_call.1} parent=11 // pred_fallthru
          _
        // Predicated region
        $region25: #{tpu_custom_call.1} parent=11 // pred_check
          %p221 = pneg %p148
        $region26: #{tpu_custom_call.1} parent=11 // pred_check_branch
          %223 = sbr.rel (%p221) target = $region28
        $region27: #{tpu_custom_call.1} parent=11 // pred_region
          _
        $region28: #{tpu_custom_call.1} parent=11 // pred_fallthru
          _
      $region12: #{tpu_custom_call.1} parent=5 // pred_fallthru
        _
      %p224 = scmp.lt.s32.totalorder %s19, 2
      // Predicated region
      $region29: #{tpu_custom_call.1} parent=5 // pred_check
        %p225 = pneg %p224
      $region30: #{tpu_custom_call.1} parent=5 // pred_check_branch
        %227 = sbr.rel (%p225) target = $region32
      $region31: #{tpu_custom_call.1} parent=5 // pred_region
        // Predicated region
        $region33: #{tpu_custom_call.1} parent=31 // pred_check
          %p228 = pneg %p53
        $region34: #{tpu_custom_call.1} parent=31 // pred_check_branch
          %230 = sbr.rel (%p228) target = $region36
        $region35: #{tpu_custom_call.1} parent=31 // pred_region
          %s231 = sand.u32 %s43, 1
          %s232 = scalar_lea.sflag [#allocation4], %s231
          %s233 = sand.u32 %s43, 1
          %s234 = smul.addr %s233, 1024
          %s235 = scalar_lea.vmem [#allocation3], %s234
          %s236 = smul.u32 32, %s26
          %s237 = smul.u32 4, %s27
          %s239 = ssub.s32 16384, 16384
          %240 = vsyncadd %s232, %s239
          %s241 = smul.addr %s236, 4
          %s242 = sadd.s32 %s237, %s241
          %s243 = smul.addr %s242, 128
          %s244 = scalar_lea.hbm %s0, %s243
          %s245 = sshll.u32 %s235, 4
          %s246 = int_to_ptr.vmem [resolvable:$true] %s245
          %251 = dma.hbm_to_vmem [thread:$0]  %s244, 16384, %s246, %s232, 512, 512, 32
        $region36: #{tpu_custom_call.1} parent=31 // pred_fallthru
          _
      $region32: #{tpu_custom_call.1} parent=5 // pred_fallthru
        _
      %p252 = scmp.le.s32.totalorder 1, %s19
      %p253 = scmp.lt.s32.totalorder %s19, 3
      %p254 = pnand %p252, %p253
      %p255 = pneg %p254
      // Predicated region
      $region37: #{tpu_custom_call.1} parent=5 // pred_check
        _
      $region38: #{tpu_custom_call.1} parent=5 // pred_check_branch
        %257 = sbr.rel (%p254) target = $region40
      $region39: #{tpu_custom_call.1} parent=5 // pred_region
        %s258 = ssub.s32 %s19, 1
        %s259 = sand.u32 %s46, 1
        %s260 = scalar_lea.sflag [#allocation4], %s259
        %s261 = sand.u32 %s46, 1
        %s262 = smul.addr %s261, 1024
        %s263 = scalar_lea.vmem [#allocation3], %s262
        // Predicated region
        $region41: #{tpu_custom_call.1} parent=39 // pred_check
          %p264 = pneg %p59
        $region42: #{tpu_custom_call.1} parent=39 // pred_check_branch
          %266 = sbr.rel (%p264) target = $region44
        $region43: #{tpu_custom_call.1} parent=39 // pred_region
          %267 = dma.done %s260, 16384
        $region44: #{tpu_custom_call.1} parent=39 // pred_fallthru
          _
        // Predicated region
        $region45: #{tpu_custom_call.1} parent=39 // pred_check
          %p268 = pneg %p85
        $region46: #{tpu_custom_call.1} parent=39 // pred_check_branch
          %270 = sbr.rel (%p268) target = $region48
        $region47: #{tpu_custom_call.1} parent=39 // pred_region
          %271 = dma.done [#allocation7], 4096
        $region48: #{tpu_custom_call.1} parent=39 // pred_fallthru
          _
        // Predicated region
        $region49: #{tpu_custom_call.1} parent=39 // pred_check
          %p272 = pneg %p106
        $region50: #{tpu_custom_call.1} parent=39 // pred_check_branch
          %274 = sbr.rel (%p272) target = $region52
        $region51: #{tpu_custom_call.1} parent=39 // pred_region
          %275 = dma.done [#allocation7], 1024
        $region52: #{tpu_custom_call.1} parent=39 // pred_fallthru
          _
        %s276 = sand.u32 %s46, 1
        %s277 = scalar_lea.sflag [#allocation4], %s276
        %s278 = sand.u32 %s46, 1
        %s279 = smul.addr %s278, 1024
        %s280 = scalar_lea.vmem [#allocation3], %s279
        %p281 = pneg %p59
        %p282 = pneg %p56
        %p283 = pneg %p85
        %p284 = pneg %p82
        %p285 = pneg %p106
        %p286 = pneg %p103
        %p287 = pneg %p127
        %p288 = pneg %p124
        %p289 = pneg %p148
        %p290 = pneg %p145
        %p291 = pneg %p174
        %p292 = pneg %p171
        %s293 = sand.u32 %s161, 1
        %s294 = scalar_lea.sflag [#allocation5], %s293
        %s295 = sand.u32 %s161, 1
        %s296 = smul.addr %s295, 256
        %s297 = scalar_lea.vmem [#allocation9], %s296
        %s298 = smul.u32 32, %s28
        %s299 = smul.u32 4, %s29
        %s300 = smul.u32 64, %s29
        %s301 = smul.u32 32, %s28
        %p303 = scmp.eq.s32.totalorder %s29, 0
        // Predicated region
        $region53: #{tpu_custom_call.1} parent=39 // pred_check
          %p304 = pneg %p303
        $region54: #{tpu_custom_call.1} parent=39 // pred_check_branch
          %306 = sbr.rel (%p304) target = $region56
        $region55: #{tpu_custom_call.1} parent=39 // pred_region
          %v307 = vld [vmem:[%s3] sm:$0x1]
          %v309 = vlaneseq
          %v310 = vshrl.u32 %v309, 7
          %v311 = vsub.s32 0, %v310
          %v312 = vrot.slane %v307, %v311
          %314 = vst [vmem:[%s297] sm:$0xff] %v312
          %315 = vst [vmem:[%s297 + $0x8] sm:$0xff] %v312
          %316 = vst [vmem:[%s297 + $0x10] sm:$0xff] %v312
          %317 = vst [vmem:[%s297 + $0x18] sm:$0xff] %v312
          %318 = vst [vmem:[%s297 + $0x20] sm:$0xff] %v312
          %319 = vst [vmem:[%s297 + $0x28] sm:$0xff] %v312
          %320 = vst [vmem:[%s297 + $0x30] sm:$0xff] %v312
          %321 = vst [vmem:[%s297 + $0x38] sm:$0xff] %v312
          %322 = vst [vmem:[%s297 + $0x40] sm:$0xff] %v312
          %323 = vst [vmem:[%s297 + $0x48] sm:$0xff] %v312
          %324 = vst [vmem:[%s297 + $0x50] sm:$0xff] %v312
          %325 = vst [vmem:[%s297 + $0x58] sm:$0xff] %v312
          %326 = vst [vmem:[%s297 + $0x60] sm:$0xff] %v312
          %327 = vst [vmem:[%s297 + $0x68] sm:$0xff] %v312
          %328 = vst [vmem:[%s297 + $0x70] sm:$0xff] %v312
          %329 = vst [vmem:[%s297 + $0x78] sm:$0xff] %v312
          %330 = vst [vmem:[%s297 + $0x80] sm:$0xff] %v312
          %331 = vst [vmem:[%s297 + $0x88] sm:$0xff] %v312
          %332 = vst [vmem:[%s297 + $0x90] sm:$0xff] %v312
          %333 = vst [vmem:[%s297 + $0x98] sm:$0xff] %v312
          %334 = vst [vmem:[%s297 + $0xa0] sm:$0xff] %v312
          %335 = vst [vmem:[%s297 + $0xa8] sm:$0xff] %v312
          %336 = vst [vmem:[%s297 + $0xb0] sm:$0xff] %v312
          %337 = vst [vmem:[%s297 + $0xb8] sm:$0xff] %v312
          %338 = vst [vmem:[%s297 + $0xc0] sm:$0xff] %v312
          %339 = vst [vmem:[%s297 + $0xc8] sm:$0xff] %v312
          %340 = vst [vmem:[%s297 + $0xd0] sm:$0xff] %v312
          %341 = vst [vmem:[%s297 + $0xd8] sm:$0xff] %v312
          %342 = vst [vmem:[%s297 + $0xe0] sm:$0xff] %v312
          %343 = vst [vmem:[%s297 + $0xe8] sm:$0xff] %v312
          %344 = vst [vmem:[%s297 + $0xf0] sm:$0xff] %v312
          %345 = vst [vmem:[%s297 + $0xf8] sm:$0xff] %v312
        $region56: #{tpu_custom_call.1} parent=39 // pred_fallthru
          _
        %v346 = vld [vmem:[#allocation6] sm:$0xf]
        %v347 = vld [vmem:[#allocation6 + $0x4] sm:$0xf]
        %v348 = vld [vmem:[#allocation6 + $0x8] sm:$0xf]
        %v349 = vld [vmem:[#allocation6 + $0xc] sm:$0xf]
        %v350 = vld [vmem:[#allocation6 + $0x10] sm:$0xf]
        %v351 = vld [vmem:[#allocation6 + $0x14] sm:$0xf]
        %v352 = vld [vmem:[#allocation6 + $0x18] sm:$0xf]
        %v353 = vld [vmem:[#allocation6 + $0x1c] sm:$0xf]
        %v354 = vld [vmem:[#allocation6 + $0x20] sm:$0xf]
        %v355 = vld [vmem:[#allocation6 + $0x24] sm:$0xf]
        %v356 = vld [vmem:[#allocation6 + $0x28] sm:$0xf]
        %v357 = vld [vmem:[#allocation6 + $0x2c] sm:$0xf]
        %v358 = vld [vmem:[#allocation6 + $0x30] sm:$0xf]
        %v359 = vld [vmem:[#allocation6 + $0x34] sm:$0xf]
        %v360 = vld [vmem:[#allocation6 + $0x38] sm:$0xf]
        %v361 = vld [vmem:[#allocation6 + $0x3c] sm:$0xf]
        %v362 = vld [vmem:[#allocation6 + $0x40] sm:$0xf]
        %v363 = vld [vmem:[#allocation6 + $0x44] sm:$0xf]
        %v364 = vld [vmem:[#allocation6 + $0x48] sm:$0xf]
        %v365 = vld [vmem:[#allocation6 + $0x4c] sm:$0xf]
        %v366 = vld [vmem:[#allocation6 + $0x50] sm:$0xf]
        %v367 = vld [vmem:[#allocation6 + $0x54] sm:$0xf]
        %v368 = vld [vmem:[#allocation6 + $0x58] sm:$0xf]
        %v369 = vld [vmem:[#allocation6 + $0x5c] sm:$0xf]
        %v370 = vld [vmem:[#allocation6 + $0x60] sm:$0xf]
        %v371 = vld [vmem:[#allocation6 + $0x64] sm:$0xf]
        %v372 = vld [vmem:[#allocation6 + $0x68] sm:$0xf]
        %v373 = vld [vmem:[#allocation6 + $0x6c] sm:$0xf]
        %v374 = vld [vmem:[#allocation6 + $0x70] sm:$0xf]
        %v375 = vld [vmem:[#allocation6 + $0x74] sm:$0xf]
        %v376 = vld [vmem:[#allocation6 + $0x78] sm:$0xf]
        %v377 = vld [vmem:[#allocation6 + $0x7c] sm:$0xf]
        %v378 = vld [vmem:[#allocation6 + $0x80] sm:$0xf]
        %v379 = vld [vmem:[#allocation6 + $0x84] sm:$0xf]
        %v380 = vld [vmem:[#allocation6 + $0x88] sm:$0xf]
        %v381 = vld [vmem:[#allocation6 + $0x8c] sm:$0xf]
        %v382 = vld [vmem:[#allocation6 + $0x90] sm:$0xf]
        %v383 = vld [vmem:[#allocation6 + $0x94] sm:$0xf]
        %v384 = vld [vmem:[#allocation6 + $0x98] sm:$0xf]
        %v385 = vld [vmem:[#allocation6 + $0x9c] sm:$0xf]
        %v386 = vld [vmem:[#allocation6 + $0xa0] sm:$0xf]
        %v387 = vld [vmem:[#allocation6 + $0xa4] sm:$0xf]
        %v388 = vld [vmem:[#allocation6 + $0xa8] sm:$0xf]
        %v389 = vld [vmem:[#allocation6 + $0xac] sm:$0xf]
        %v390 = vld [vmem:[#allocation6 + $0xb0] sm:$0xf]
        %v391 = vld [vmem:[#allocation6 + $0xb4] sm:$0xf]
        %v392 = vld [vmem:[#allocation6 + $0xb8] sm:$0xf]
        %v393 = vld [vmem:[#allocation6 + $0xbc] sm:$0xf]
        %v394 = vld [vmem:[#allocation6 + $0xc0] sm:$0xf]
        %v395 = vld [vmem:[#allocation6 + $0xc4] sm:$0xf]
        %v396 = vld [vmem:[#allocation6 + $0xc8] sm:$0xf]
        %v397 = vld [vmem:[#allocation6 + $0xcc] sm:$0xf]
        %v398 = vld [vmem:[#allocation6 + $0xd0] sm:$0xf]
        %v399 = vld [vmem:[#allocation6 + $0xd4] sm:$0xf]
        %v400 = vld [vmem:[#allocation6 + $0xd8] sm:$0xf]
        %v401 = vld [vmem:[#allocation6 + $0xdc] sm:$0xf]
        %v402 = vld [vmem:[#allocation6 + $0xe0] sm:$0xf]
        %v403 = vld [vmem:[#allocation6 + $0xe4] sm:$0xf]
        %v404 = vld [vmem:[#allocation6 + $0xe8] sm:$0xf]
        %v405 = vld [vmem:[#allocation6 + $0xec] sm:$0xf]
        %v406 = vld [vmem:[#allocation6 + $0xf0] sm:$0xf]
        %v407 = vld [vmem:[#allocation6 + $0xf4] sm:$0xf]
        %v408 = vld [vmem:[#allocation6 + $0xf8] sm:$0xf]
        %v409 = vld [vmem:[#allocation6 + $0xfc] sm:$0xf]
        %v410 = vld [vmem:[#allocation8] sm:$0xf]
        %v411 = vld [vmem:[#allocation8 + $0x4] sm:$0xf]
        %v412 = vld [vmem:[#allocation8 + $0x8] sm:$0xf]
        %v413 = vld [vmem:[#allocation8 + $0xc] sm:$0xf]
        %v414 = vld [vmem:[#allocation8 + $0x10] sm:$0xf]
        %v415 = vld [vmem:[#allocation8 + $0x14] sm:$0xf]
        %v416 = vld [vmem:[#allocation8 + $0x18] sm:$0xf]
        %v417 = vld [vmem:[#allocation8 + $0x1c] sm:$0xf]
        %v418 = vld [vmem:[#allocation8 + $0x20] sm:$0xf]
        %v419 = vld [vmem:[#allocation8 + $0x24] sm:$0xf]
        %v420 = vld [vmem:[#allocation8 + $0x28] sm:$0xf]
        %v421 = vld [vmem:[#allocation8 + $0x2c] sm:$0xf]
        %v422 = vld [vmem:[#allocation8 + $0x30] sm:$0xf]
        %v423 = vld [vmem:[#allocation8 + $0x34] sm:$0xf]
        %v424 = vld [vmem:[#allocation8 + $0x38] sm:$0xf]
        %v425 = vld [vmem:[#allocation8 + $0x3c] sm:$0xf]
        %v490 = vunpack.c.l.b16 %v346
        %v491 = vunpack.c.l.b16 %v347
        %v492 = vunpack.c.l.b16 %v348
        %v493 = vunpack.c.l.b16 %v349
        %v494 = vunpack.c.l.b16 %v350
        %v495 = vunpack.c.l.b16 %v351
        %v496 = vunpack.c.l.b16 %v352
        %v497 = vunpack.c.l.b16 %v353
        %v498 = vunpack.c.l.b16 %v354
        %v499 = vunpack.c.l.b16 %v355
        %v500 = vunpack.c.l.b16 %v356
        %v501 = vunpack.c.l.b16 %v357
        %v502 = vunpack.c.l.b16 %v358
        %v503 = vunpack.c.l.b16 %v359
        %v504 = vunpack.c.l.b16 %v360
        %v505 = vunpack.c.l.b16 %v361
        %v506 = vunpack.c.l.b16 %v362
        %v507 = vunpack.c.l.b16 %v363
        %v508 = vunpack.c.l.b16 %v364
        %v509 = vunpack.c.l.b16 %v365
        %v510 = vunpack.c.l.b16 %v366
        %v511 = vunpack.c.l.b16 %v367
        %v512 = vunpack.c.l.b16 %v368
        %v513 = vunpack.c.l.b16 %v369
        %v514 = vunpack.c.l.b16 %v370
        %v515 = vunpack.c.l.b16 %v371
        %v516 = vunpack.c.l.b16 %v372
        %v517 = vunpack.c.l.b16 %v373
        %v518 = vunpack.c.l.b16 %v374
        %v519 = vunpack.c.l.b16 %v375
        %v520 = vunpack.c.l.b16 %v376
        %v521 = vunpack.c.l.b16 %v377
        %v522 = vunpack.c.l.b16 %v378
        %v523 = vunpack.c.l.b16 %v379
        %v524 = vunpack.c.l.b16 %v380
        %v525 = vunpack.c.l.b16 %v381
        %v526 = vunpack.c.l.b16 %v382
        %v527 = vunpack.c.l.b16 %v383
        %v528 = vunpack.c.l.b16 %v384
        %v529 = vunpack.c.l.b16 %v385
        %v530 = vunpack.c.l.b16 %v386
        %v531 = vunpack.c.l.b16 %v387
        %v532 = vunpack.c.l.b16 %v388
        %v533 = vunpack.c.l.b16 %v389
        %v534 = vunpack.c.l.b16 %v390
        %v535 = vunpack.c.l.b16 %v391
        %v536 = vunpack.c.l.b16 %v392
        %v537 = vunpack.c.l.b16 %v393
        %v538 = vunpack.c.l.b16 %v394
        %v539 = vunpack.c.l.b16 %v395
        %v540 = vunpack.c.l.b16 %v396
        %v541 = vunpack.c.l.b16 %v397
        %v542 = vunpack.c.l.b16 %v398
        %v543 = vunpack.c.l.b16 %v399
        %v544 = vunpack.c.l.b16 %v400
        %v545 = vunpack.c.l.b16 %v401
        %v546 = vunpack.c.l.b16 %v402
        %v547 = vunpack.c.l.b16 %v403
        %v548 = vunpack.c.l.b16 %v404
        %v549 = vunpack.c.l.b16 %v405
        %v550 = vunpack.c.l.b16 %v406
        %v551 = vunpack.c.l.b16 %v407
        %v552 = vunpack.c.l.b16 %v408
        %v553 = vunpack.c.l.b16 %v409
        %v554 = vpack.c.b16 %v491, %v490
        %v555 = vpack.c.b16 %v493, %v492
        %v556 = vpack.c.b16 %v495, %v494
        %v557 = vpack.c.b16 %v497, %v496
        %v558 = vpack.c.b16 %v499, %v498
        %v559 = vpack.c.b16 %v501, %v500
        %v560 = vpack.c.b16 %v503, %v502
        %v561 = vpack.c.b16 %v505, %v504
        %v562 = vpack.c.b16 %v507, %v506
        %v563 = vpack.c.b16 %v509, %v508
        %v564 = vpack.c.b16 %v511, %v510
        %v565 = vpack.c.b16 %v513, %v512
        %v566 = vpack.c.b16 %v515, %v514
        %v567 = vpack.c.b16 %v517, %v516
        %v568 = vpack.c.b16 %v519, %v518
        %v569 = vpack.c.b16 %v521, %v520
        %v570 = vpack.c.b16 %v523, %v522
        %v571 = vpack.c.b16 %v525, %v524
        %v572 = vpack.c.b16 %v527, %v526
        %v573 = vpack.c.b16 %v529, %v528
        %v574 = vpack.c.b16 %v531, %v530
        %v575 = vpack.c.b16 %v533, %v532
        %v576 = vpack.c.b16 %v535, %v534
        %v577 = vpack.c.b16 %v537, %v536
        %v578 = vpack.c.b16 %v539, %v538
        %v579 = vpack.c.b16 %v541, %v540
        %v580 = vpack.c.b16 %v543, %v542
        %v581 = vpack.c.b16 %v545, %v544
        %v582 = vpack.c.b16 %v547, %v546
        %v583 = vpack.c.b16 %v549, %v548
        %v584 = vpack.c.b16 %v551, %v550
        %v585 = vpack.c.b16 %v553, %v552
        %v634 = vunpack.c.l.b16 %v410
        %v635 = vunpack.c.l.b16 %v411
        %v636 = vunpack.c.l.b16 %v412
        %v637 = vunpack.c.l.b16 %v413
        %v638 = vunpack.c.l.b16 %v414
        %v639 = vunpack.c.l.b16 %v415
        %v640 = vunpack.c.l.b16 %v416
        %v641 = vunpack.c.l.b16 %v417
        %v642 = vunpack.c.l.b16 %v418
        %v643 = vunpack.c.l.b16 %v419
        %v644 = vunpack.c.l.b16 %v420
        %v645 = vunpack.c.l.b16 %v421
        %v646 = vunpack.c.l.b16 %v422
        %v647 = vunpack.c.l.b16 %v423
        %v648 = vunpack.c.l.b16 %v424
        %v649 = vunpack.c.l.b16 %v425
        %v650 = vpack.c.b16 %v635, %v634
        %v651 = vpack.c.b16 %v637, %v636
        %v652 = vpack.c.b16 %v639, %v638
        %v653 = vpack.c.b16 %v641, %v640
        %v654 = vpack.c.b16 %v643, %v642
        %v655 = vpack.c.b16 %v645, %v644
        %v656 = vpack.c.b16 %v647, %v646
        %v657 = vpack.c.b16 %v649, %v648
        %666 = vmatprep.subr.bf16.mxu0 0
        %667 = vmatpush1.bf16.msra.mxu0 %v657
        %668 = vmatprep.subr.bf16.mxu0 0
        %669 = vmatpush1.bf16.msra.mxu0 %v656
        %670 = vmatprep.subr.bf16.mxu0 0
        %671 = vmatpush1.bf16.msra.mxu0 %v655
        %672 = vmatprep.subr.bf16.mxu0 0
        %673 = vmatpush1.bf16.msra.mxu0 %v654
        %674 = vmatprep.subr.bf16.mxu0 0
        %675 = vmatpush1.bf16.msra.mxu0 %v653
        %676 = vmatprep.subr.bf16.mxu0 0
        %677 = vmatpush1.bf16.msra.mxu0 %v652
        %678 = vmatprep.subr.bf16.mxu0 0
        %679 = vmatpush1.bf16.msra.mxu0 %v651
        %680 = vmatprep.subr.bf16.mxu0 0
        %681 = vmatpush1.bf16.msra.mxu0 %v650
        %682 = vmatprep.subr.bf16.mxu0 0
        %683 = vmatpush2.bf16.msra.mxu0 0
        %684 = vmatprep.subr.bf16.mxu0 0
        %685 = vmatpush2.bf16.msra.mxu0 0
        %686 = vmatprep.subr.bf16.mxu0 0
        %687 = vmatpush2.bf16.msra.mxu0 0
        %688 = vmatprep.subr.bf16.mxu0 0
        %689 = vmatpush2.bf16.msra.mxu0 0
        %690 = vmatprep.subr.bf16.mxu0 0
        %691 = vmatpush2.bf16.msra.mxu0 0
        %692 = vmatprep.subr.bf16.mxu0 0
        %693 = vmatpush2.bf16.msra.mxu0 0
        %694 = vmatprep.subr.bf16.mxu0 0
        %695 = vmatpush2.bf16.msra.mxu0 0
        %696 = vmatprep.subr.bf16.mxu0 0
        %697 = vmatpush2.bf16.msra.mxu0 0
        %698 = vmatprep.mubr.bf16.mxu0 0
        %699 = vmatmul.mubr.bf16.gmra.mxu0 %v554
        %v700 = vpop.f32.mrf.mxu0
        %v701 = vadd.f32 0.0, %v700
        %v702 = vpop.f32.mrf.mxu0
        %v703 = vpop.f32.mrf.mxu0
        %v704 = vadd.f32 0.0, %v703
        %v705 = vpop.f32.mrf.mxu0
        %706 = vmatprep.mubr.bf16.mxu0 0
        %707 = vmatmul.mubr.bf16.gmra.mxu0 %v555
        %v708 = vpop.f32.mrf.mxu0
        %v709 = vadd.f32 0.0, %v708
        %v710 = vpop.f32.mrf.mxu0
        %v711 = vpop.f32.mrf.mxu0
        %v712 = vadd.f32 0.0, %v711
        %v713 = vpop.f32.mrf.mxu0
        %714 = vmatprep.mubr.bf16.mxu0 0
        %715 = vmatmul.mubr.bf16.gmra.mxu0 %v556
        %v716 = vpop.f32.mrf.mxu0
        %v717 = vadd.f32 0.0, %v716
        %v718 = vpop.f32.mrf.mxu0
        %v719 = vpop.f32.mrf.mxu0
        %v720 = vadd.f32 0.0, %v719
        %v721 = vpop.f32.mrf.mxu0
        %722 = vmatprep.mubr.bf16.mxu0 0
        %723 = vmatmul.mubr.bf16.gmra.mxu0 %v557
        %v724 = vpop.f32.mrf.mxu0
        %v725 = vadd.f32 0.0, %v724
        %v726 = vpop.f32.mrf.mxu0
        %v727 = vpop.f32.mrf.mxu0
        %v728 = vadd.f32 0.0, %v727
        %v729 = vpop.f32.mrf.mxu0
        %730 = vmatprep.mubr.bf16.mxu0 0
        %731 = vmatmul.mubr.bf16.gmra.mxu0 %v558
        %v732 = vpop.f32.mrf.mxu0
        %v733 = vadd.f32 0.0, %v732
        %v734 = vpop.f32.mrf.mxu0
        %v735 = vpop.f32.mrf.mxu0
        %v736 = vadd.f32 0.0, %v735
        %v737 = vpop.f32.mrf.mxu0
        %738 = vmatprep.mubr.bf16.mxu0 0
        %739 = vmatmul.mubr.bf16.gmra.mxu0 %v559
        %v740 = vpop.f32.mrf.mxu0
        %v741 = vadd.f32 0.0, %v740
        %v742 = vpop.f32.mrf.mxu0
        %v743 = vpop.f32.mrf.mxu0
        %v744 = vadd.f32 0.0, %v743
        %v745 = vpop.f32.mrf.mxu0
        %746 = vmatprep.mubr.bf16.mxu0 0
        %747 = vmatmul.mubr.bf16.gmra.mxu0 %v560
        %v748 = vpop.f32.mrf.mxu0
        %v749 = vadd.f32 0.0, %v748
        %v750 = vpop.f32.mrf.mxu0
        %v751 = vpop.f32.mrf.mxu0
        %v752 = vadd.f32 0.0, %v751
        %v753 = vpop.f32.mrf.mxu0
        %754 = vmatprep.mubr.bf16.mxu0 0
        %755 = vmatmul.mubr.bf16.gmra.mxu0 %v561
        %v756 = vpop.f32.mrf.mxu0
        %v757 = vadd.f32 0.0, %v756
        %v758 = vpop.f32.mrf.mxu0
        %v759 = vpop.f32.mrf.mxu0
        %v760 = vadd.f32 0.0, %v759
        %v761 = vpop.f32.mrf.mxu0
        %762 = vmatprep.mubr.bf16.mxu0 0
        %763 = vmatmul.mubr.bf16.gmra.mxu0 %v562
        %v764 = vpop.f32.mrf.mxu0
        %v765 = vadd.f32 0.0, %v764
        %v766 = vpop.f32.mrf.mxu0
        %v767 = vpop.f32.mrf.mxu0
        %v768 = vadd.f32 0.0, %v767
        %v769 = vpop.f32.mrf.mxu0
        %770 = vmatprep.mubr.bf16.mxu0 0
        %771 = vmatmul.mubr.bf16.gmra.mxu0 %v563
        %v772 = vpop.f32.mrf.mxu0
        %v773 = vadd.f32 0.0, %v772
        %v774 = vpop.f32.mrf.mxu0
        %v775 = vpop.f32.mrf.mxu0
        %v776 = vadd.f32 0.0, %v775
        %v777 = vpop.f32.mrf.mxu0
        %778 = vmatprep.mubr.bf16.mxu0 0
        %779 = vmatmul.mubr.bf16.gmra.mxu0 %v564
        %v780 = vpop.f32.mrf.mxu0
        %v781 = vadd.f32 0.0, %v780
        %v782 = vpop.f32.mrf.mxu0
        %v783 = vpop.f32.mrf.mxu0
        %v784 = vadd.f32 0.0, %v783
        %v785 = vpop.f32.mrf.mxu0
        %786 = vmatprep.mubr.bf16.mxu0 0
        %787 = vmatmul.mubr.bf16.gmra.mxu0 %v565
        %v788 = vpop.f32.mrf.mxu0
        %v789 = vadd.f32 0.0, %v788
        %v790 = vpop.f32.mrf.mxu0
        %v791 = vpop.f32.mrf.mxu0
        %v792 = vadd.f32 0.0, %v791
        %v793 = vpop.f32.mrf.mxu0
        %794 = vmatprep.mubr.bf16.mxu0 0
        %795 = vmatmul.mubr.bf16.gmra.mxu0 %v566
        %v796 = vpop.f32.mrf.mxu0
        %v797 = vadd.f32 0.0, %v796
        %v798 = vpop.f32.mrf.mxu0
        %v799 = vpop.f32.mrf.mxu0
        %v800 = vadd.f32 0.0, %v799
        %v801 = vpop.f32.mrf.mxu0
        %802 = vmatprep.mubr.bf16.mxu0 0
        %803 = vmatmul.mubr.bf16.gmra.mxu0 %v567
        %v804 = vpop.f32.mrf.mxu0
        %v805 = vadd.f32 0.0, %v804
        %v806 = vpop.f32.mrf.mxu0
        %v807 = vpop.f32.mrf.mxu0
        %v808 = vadd.f32 0.0, %v807
        %v809 = vpop.f32.mrf.mxu0
        %810 = vmatprep.mubr.bf16.mxu0 0
        %811 = vmatmul.mubr.bf16.gmra.mxu0 %v568
        %v812 = vpop.f32.mrf.mxu0
        %v813 = vadd.f32 0.0, %v812
        %v814 = vpop.f32.mrf.mxu0
        %v815 = vpop.f32.mrf.mxu0
        %v816 = vadd.f32 0.0, %v815
        %v817 = vpop.f32.mrf.mxu0
        %818 = vmatprep.mubr.bf16.mxu0 0
        %819 = vmatmul.mubr.bf16.gmra.mxu0 %v569
        %v820 = vpop.f32.mrf.mxu0
        %v821 = vadd.f32 0.0, %v820
        %v822 = vpop.f32.mrf.mxu0
        %v823 = vpop.f32.mrf.mxu0
        %v824 = vadd.f32 0.0, %v823
        %v825 = vpop.f32.mrf.mxu0
        %826 = vmatprep.mubr.bf16.mxu0 0
        %827 = vmatmul.mubr.bf16.gmra.mxu0 %v570
        %v828 = vpop.f32.mrf.mxu0
        %v829 = vadd.f32 0.0, %v828
        %v830 = vpop.f32.mrf.mxu0
        %v831 = vpop.f32.mrf.mxu0
        %v832 = vadd.f32 0.0, %v831
        %v833 = vpop.f32.mrf.mxu0
        %834 = vmatprep.mubr.bf16.mxu0 0
        %835 = vmatmul.mubr.bf16.gmra.mxu0 %v571
        %v836 = vpop.f32.mrf.mxu0
        %v837 = vadd.f32 0.0, %v836
        %v838 = vpop.f32.mrf.mxu0
        %v839 = vpop.f32.mrf.mxu0
        %v840 = vadd.f32 0.0, %v839
        %v841 = vpop.f32.mrf.mxu0
        %842 = vmatprep.mubr.bf16.mxu0 0
        %843 = vmatmul.mubr.bf16.gmra.mxu0 %v572
        %v844 = vpop.f32.mrf.mxu0
        %v845 = vadd.f32 0.0, %v844
        %v846 = vpop.f32.mrf.mxu0
        %v847 = vpop.f32.mrf.mxu0
        %v848 = vadd.f32 0.0, %v847
        %v849 = vpop.f32.mrf.mxu0
        %850 = vmatprep.mubr.bf16.mxu0 0
        %851 = vmatmul.mubr.bf16.gmra.mxu0 %v573
        %v852 = vpop.f32.mrf.mxu0
        %v853 = vadd.f32 0.0, %v852
        %v854 = vpop.f32.mrf.mxu0
        %v855 = vpop.f32.mrf.mxu0
        %v856 = vadd.f32 0.0, %v855
        %v857 = vpop.f32.mrf.mxu0
        %858 = vmatprep.mubr.bf16.mxu0 0
        %859 = vmatmul.mubr.bf16.gmra.mxu0 %v574
        %v860 = vpop.f32.mrf.mxu0
        %v861 = vadd.f32 0.0, %v860
        %v862 = vpop.f32.mrf.mxu0
        %v863 = vpop.f32.mrf.mxu0
        %v864 = vadd.f32 0.0, %v863
        %v865 = vpop.f32.mrf.mxu0
        %866 = vmatprep.mubr.bf16.mxu0 0
        %867 = vmatmul.mubr.bf16.gmra.mxu0 %v575
        %v868 = vpop.f32.mrf.mxu0
        %v869 = vadd.f32 0.0, %v868
        %v870 = vpop.f32.mrf.mxu0
        %v871 = vpop.f32.mrf.mxu0
        %v872 = vadd.f32 0.0, %v871
        %v873 = vpop.f32.mrf.mxu0
        %874 = vmatprep.mubr.bf16.mxu0 0
        %875 = vmatmul.mubr.bf16.gmra.mxu0 %v576
        %v876 = vpop.f32.mrf.mxu0
        %v877 = vadd.f32 0.0, %v876
        %v878 = vpop.f32.mrf.mxu0
        %v879 = vpop.f32.mrf.mxu0
        %v880 = vadd.f32 0.0, %v879
        %v881 = vpop.f32.mrf.mxu0
        %882 = vmatprep.mubr.bf16.mxu0 0
        %883 = vmatmul.mubr.bf16.gmra.mxu0 %v577
        %v884 = vpop.f32.mrf.mxu0
        %v885 = vadd.f32 0.0, %v884
        %v886 = vpop.f32.mrf.mxu0
        %v887 = vpop.f32.mrf.mxu0
        %v888 = vadd.f32 0.0, %v887
        %v889 = vpop.f32.mrf.mxu0
        %890 = vmatprep.mubr.bf16.mxu0 0
        %891 = vmatmul.mubr.bf16.gmra.mxu0 %v578
        %v892 = vpop.f32.mrf.mxu0
        %v893 = vadd.f32 0.0, %v892
        %v894 = vpop.f32.mrf.mxu0
        %v895 = vpop.f32.mrf.mxu0
        %v896 = vadd.f32 0.0, %v895
        %v897 = vpop.f32.mrf.mxu0
        %898 = vmatprep.mubr.bf16.mxu0 0
        %899 = vmatmul.mubr.bf16.gmra.mxu0 %v579
        %v900 = vpop.f32.mrf.mxu0
        %v901 = vadd.f32 0.0, %v900
        %v902 = vpop.f32.mrf.mxu0
        %v903 = vpop.f32.mrf.mxu0
        %v904 = vadd.f32 0.0, %v903
        %v905 = vpop.f32.mrf.mxu0
        %906 = vmatprep.mubr.bf16.mxu0 0
        %907 = vmatmul.mubr.bf16.gmra.mxu0 %v580
        %v908 = vpop.f32.mrf.mxu0
        %v909 = vadd.f32 0.0, %v908
        %v910 = vpop.f32.mrf.mxu0
        %v911 = vpop.f32.mrf.mxu0
        %v912 = vadd.f32 0.0, %v911
        %v913 = vpop.f32.mrf.mxu0
        %914 = vmatprep.mubr.bf16.mxu0 0
        %915 = vmatmul.mubr.bf16.gmra.mxu0 %v581
        %v916 = vpop.f32.mrf.mxu0
        %v917 = vadd.f32 0.0, %v916
        %v918 = vpop.f32.mrf.mxu0
        %v919 = vpop.f32.mrf.mxu0
        %v920 = vadd.f32 0.0, %v919
        %v921 = vpop.f32.mrf.mxu0
        %922 = vmatprep.mubr.bf16.mxu0 0
        %923 = vmatmul.mubr.bf16.gmra.mxu0 %v582
        %v924 = vpop.f32.mrf.mxu0
        %v925 = vadd.f32 0.0, %v924
        %v926 = vpop.f32.mrf.mxu0
        %v927 = vpop.f32.mrf.mxu0
        %v928 = vadd.f32 0.0, %v927
        %v929 = vpop.f32.mrf.mxu0
        %930 = vmatprep.mubr.bf16.mxu0 0
        %931 = vmatmul.mubr.bf16.gmra.mxu0 %v583
        %v932 = vpop.f32.mrf.mxu0
        %v933 = vadd.f32 0.0, %v932
        %v934 = vpop.f32.mrf.mxu0
        %v935 = vpop.f32.mrf.mxu0
        %v936 = vadd.f32 0.0, %v935
        %v937 = vpop.f32.mrf.mxu0
        %938 = vmatprep.mubr.bf16.mxu0 0
        %939 = vmatmul.mubr.bf16.gmra.mxu0 %v584
        %v940 = vpop.f32.mrf.mxu0
        %v941 = vadd.f32 0.0, %v940
        %v942 = vpop.f32.mrf.mxu0
        %v943 = vpop.f32.mrf.mxu0
        %v944 = vadd.f32 0.0, %v943
        %v945 = vpop.f32.mrf.mxu0
        %946 = vmatprep.mubr.bf16.mxu0 0
        %947 = vmatmul.mubr.bf16.gmra.mxu0 %v585
        %v948 = vpop.f32.mrf.mxu0
        %v949 = vadd.f32 0.0, %v948
        %v950 = vpop.f32.mrf.mxu0
        %v951 = vpop.f32.mrf.mxu0
        %v952 = vadd.f32 0.0, %v951
        %v953 = vpop.f32.mrf.mxu0
        %954 = vdwg.mxu0
        %v955 = vpack.c.bf16 %v704, %v701
        %v956 = vpack.c.bf16 %v712, %v709
        %v957 = vpack.c.bf16 %v720, %v717
        %v958 = vpack.c.bf16 %v728, %v725
        %v959 = vpack.c.bf16 %v736, %v733
        %v960 = vpack.c.bf16 %v744, %v741
        %v961 = vpack.c.bf16 %v752, %v749
        %v962 = vpack.c.bf16 %v760, %v757
        %v963 = vpack.c.bf16 %v768, %v765
        %v964 = vpack.c.bf16 %v776, %v773
        %v965 = vpack.c.bf16 %v784, %v781
        %v966 = vpack.c.bf16 %v792, %v789
        %v967 = vpack.c.bf16 %v800, %v797
        %v968 = vpack.c.bf16 %v808, %v805
        %v969 = vpack.c.bf16 %v816, %v813
        %v970 = vpack.c.bf16 %v824, %v821
        %v971 = vpack.c.bf16 %v832, %v829
        %v972 = vpack.c.bf16 %v840, %v837
        %v973 = vpack.c.bf16 %v848, %v845
        %v974 = vpack.c.bf16 %v856, %v853
        %v975 = vpack.c.bf16 %v864, %v861
        %v976 = vpack.c.bf16 %v872, %v869
        %v977 = vpack.c.bf16 %v880, %v877
        %v978 = vpack.c.bf16 %v888, %v885
        %v979 = vpack.c.bf16 %v896, %v893
        %v980 = vpack.c.bf16 %v904, %v901
        %v981 = vpack.c.bf16 %v912, %v909
        %v982 = vpack.c.bf16 %v920, %v917
        %v983 = vpack.c.bf16 %v928, %v925
        %v984 = vpack.c.bf16 %v936, %v933
        %v985 = vpack.c.bf16 %v944, %v941
        %v986 = vpack.c.bf16 %v952, %v949
        %v987 = vld [vmem:[%s297] sm:$0xff]
        %v988 = vld [vmem:[%s297 + $0x8] sm:$0xff]
        %v989 = vld [vmem:[%s297 + $0x10] sm:$0xff]
        %v990 = vld [vmem:[%s297 + $0x18] sm:$0xff]
        %v991 = vld [vmem:[%s297 + $0x20] sm:$0xff]
        %v992 = vld [vmem:[%s297 + $0x28] sm:$0xff]
        %v993 = vld [vmem:[%s297 + $0x30] sm:$0xff]
        %v994 = vld [vmem:[%s297 + $0x38] sm:$0xff]
        %v995 = vld [vmem:[%s297 + $0x40] sm:$0xff]
        %v996 = vld [vmem:[%s297 + $0x48] sm:$0xff]
        %v997 = vld [vmem:[%s297 + $0x50] sm:$0xff]
        %v998 = vld [vmem:[%s297 + $0x58] sm:$0xff]
        %v999 = vld [vmem:[%s297 + $0x60] sm:$0xff]
        %v1000 = vld [vmem:[%s297 + $0x68] sm:$0xff]
        %v1001 = vld [vmem:[%s297 + $0x70] sm:$0xff]
        %v1002 = vld [vmem:[%s297 + $0x78] sm:$0xff]
        %v1003 = vld [vmem:[%s297 + $0x80] sm:$0xff]
        %v1004 = vld [vmem:[%s297 + $0x88] sm:$0xff]
        %v1005 = vld [vmem:[%s297 + $0x90] sm:$0xff]
        %v1006 = vld [vmem:[%s297 + $0x98] sm:$0xff]
        %v1007 = vld [vmem:[%s297 + $0xa0] sm:$0xff]
        %v1008 = vld [vmem:[%s297 + $0xa8] sm:$0xff]
        %v1009 = vld [vmem:[%s297 + $0xb0] sm:$0xff]
        %v1010 = vld [vmem:[%s297 + $0xb8] sm:$0xff]
        %v1011 = vld [vmem:[%s297 + $0xc0] sm:$0xff]
        %v1012 = vld [vmem:[%s297 + $0xc8] sm:$0xff]
        %v1013 = vld [vmem:[%s297 + $0xd0] sm:$0xff]
        %v1014 = vld [vmem:[%s297 + $0xd8] sm:$0xff]
        %v1015 = vld [vmem:[%s297 + $0xe0] sm:$0xff]
        %v1016 = vld [vmem:[%s297 + $0xe8] sm:$0xff]
        %v1017 = vld [vmem:[%s297 + $0xf0] sm:$0xff]
        %v1018 = vld [vmem:[%s297 + $0xf8] sm:$0xff]
        %v1019 = vld [vmem:[%s263] sm:$0xff]
        %v1020 = vld [vmem:[%s263 + $0x8] sm:$0xff]
        %v1021 = vld [vmem:[%s263 + $0x10] sm:$0xff]
        %v1022 = vld [vmem:[%s263 + $0x18] sm:$0xff]
        %v1023 = vld [vmem:[%s263 + $0x20] sm:$0xff]
        %v1024 = vld [vmem:[%s263 + $0x28] sm:$0xff]
        %v1025 = vld [vmem:[%s263 + $0x30] sm:$0xff]
        %v1026 = vld [vmem:[%s263 + $0x38] sm:$0xff]
        %v1027 = vld [vmem:[%s263 + $0x40] sm:$0xff]
        %v1028 = vld [vmem:[%s263 + $0x48] sm:$0xff]
        %v1029 = vld [vmem:[%s263 + $0x50] sm:$0xff]
        %v1030 = vld [vmem:[%s263 + $0x58] sm:$0xff]
        %v1031 = vld [vmem:[%s263 + $0x60] sm:$0xff]
        %v1032 = vld [vmem:[%s263 + $0x68] sm:$0xff]
        %v1033 = vld [vmem:[%s263 + $0x70] sm:$0xff]
        %v1034 = vld [vmem:[%s263 + $0x78] sm:$0xff]
        %v1035 = vld [vmem:[%s263 + $0x80] sm:$0xff]
        %v1036 = vld [vmem:[%s263 + $0x88] sm:$0xff]
        %v1037 = vld [vmem:[%s263 + $0x90] sm:$0xff]
        %v1038 = vld [vmem:[%s263 + $0x98] sm:$0xff]
        %v1039 = vld [vmem:[%s263 + $0xa0] sm:$0xff]
        %v1040 = vld [vmem:[%s263 + $0xa8] sm:$0xff]
        %v1041 = vld [vmem:[%s263 + $0xb0] sm:$0xff]
        %v1042 = vld [vmem:[%s263 + $0xb8] sm:$0xff]
        %v1043 = vld [vmem:[%s263 + $0xc0] sm:$0xff]
        %v1044 = vld [vmem:[%s263 + $0xc8] sm:$0xff]
        %v1045 = vld [vmem:[%s263 + $0xd0] sm:$0xff]
        %v1046 = vld [vmem:[%s263 + $0xd8] sm:$0xff]
        %v1047 = vld [vmem:[%s263 + $0xe0] sm:$0xff]
        %v1048 = vld [vmem:[%s263 + $0xe8] sm:$0xff]
        %v1049 = vld [vmem:[%s263 + $0xf0] sm:$0xff]
        %v1050 = vld [vmem:[%s263 + $0xf8] sm:$0xff]
        %v1051 = vld [vmem:[%s263 + $0x100] sm:$0xff]
        %v1052 = vld [vmem:[%s263 + $0x108] sm:$0xff]
        %v1053 = vld [vmem:[%s263 + $0x110] sm:$0xff]
        %v1054 = vld [vmem:[%s263 + $0x118] sm:$0xff]
        %v1055 = vld [vmem:[%s263 + $0x120] sm:$0xff]
        %v1056 = vld [vmem:[%s263 + $0x128] sm:$0xff]
        %v1057 = vld [vmem:[%s263 + $0x130] sm:$0xff]
        %v1058 = vld [vmem:[%s263 + $0x138] sm:$0xff]
        %v1059 = vld [vmem:[%s263 + $0x140] sm:$0xff]
        %v1060 = vld [vmem:[%s263 + $0x148] sm:$0xff]
        %v1061 = vld [vmem:[%s263 + $0x150] sm:$0xff]
        %v1062 = vld [vmem:[%s263 + $0x158] sm:$0xff]
        %v1063 = vld [vmem:[%s263 + $0x160] sm:$0xff]
        %v1064 = vld [vmem:[%s263 + $0x168] sm:$0xff]
        %v1065 = vld [vmem:[%s263 + $0x170] sm:$0xff]
        %v1066 = vld [vmem:[%s263 + $0x178] sm:$0xff]
        %v1067 = vld [vmem:[%s263 + $0x180] sm:$0xff]
        %v1068 = vld [vmem:[%s263 + $0x188] sm:$0xff]
        %v1069 = vld [vmem:[%s263 + $0x190] sm:$0xff]
        %v1070 = vld [vmem:[%s263 + $0x198] sm:$0xff]
        %v1071 = vld [vmem:[%s263 + $0x1a0] sm:$0xff]
        %v1072 = vld [vmem:[%s263 + $0x1a8] sm:$0xff]
        %v1073 = vld [vmem:[%s263 + $0x1b0] sm:$0xff]
        %v1074 = vld [vmem:[%s263 + $0x1b8] sm:$0xff]
        %v1075 = vld [vmem:[%s263 + $0x1c0] sm:$0xff]
        %v1076 = vld [vmem:[%s263 + $0x1c8] sm:$0xff]
        %v1077 = vld [vmem:[%s263 + $0x1d0] sm:$0xff]
        %v1078 = vld [vmem:[%s263 + $0x1d8] sm:$0xff]
        %v1079 = vld [vmem:[%s263 + $0x1e0] sm:$0xff]
        %v1080 = vld [vmem:[%s263 + $0x1e8] sm:$0xff]
        %v1081 = vld [vmem:[%s263 + $0x1f0] sm:$0xff]
        %v1082 = vld [vmem:[%s263 + $0x1f8] sm:$0xff]
        %v1083 = vld [vmem:[%s263 + $0x200] sm:$0xff]
        %v1084 = vld [vmem:[%s263 + $0x208] sm:$0xff]
        %v1085 = vld [vmem:[%s263 + $0x210] sm:$0xff]
        %v1086 = vld [vmem:[%s263 + $0x218] sm:$0xff]
        %v1087 = vld [vmem:[%s263 + $0x220] sm:$0xff]
        %v1088 = vld [vmem:[%s263 + $0x228] sm:$0xff]
        %v1089 = vld [vmem:[%s263 + $0x230] sm:$0xff]
        %v1090 = vld [vmem:[%s263 + $0x238] sm:$0xff]
        %v1091 = vld [vmem:[%s263 + $0x240] sm:$0xff]
        %v1092 = vld [vmem:[%s263 + $0x248] sm:$0xff]
        %v1093 = vld [vmem:[%s263 + $0x250] sm:$0xff]
        %v1094 = vld [vmem:[%s263 + $0x258] sm:$0xff]
        %v1095 = vld [vmem:[%s263 + $0x260] sm:$0xff]
        %v1096 = vld [vmem:[%s263 + $0x268] sm:$0xff]
        %v1097 = vld [vmem:[%s263 + $0x270] sm:$0xff]
        %v1098 = vld [vmem:[%s263 + $0x278] sm:$0xff]
        %v1099 = vld [vmem:[%s263 + $0x280] sm:$0xff]
        %v1100 = vld [vmem:[%s263 + $0x288] sm:$0xff]
        %v1101 = vld [vmem:[%s263 + $0x290] sm:$0xff]
        %v1102 = vld [vmem:[%s263 + $0x298] sm:$0xff]
        %v1103 = vld [vmem:[%s263 + $0x2a0] sm:$0xff]
        %v1104 = vld [vmem:[%s263 + $0x2a8] sm:$0xff]
        %v1105 = vld [vmem:[%s263 + $0x2b0] sm:$0xff]
        %v1106 = vld [vmem:[%s263 + $0x2b8] sm:$0xff]
        %v1107 = vld [vmem:[%s263 + $0x2c0] sm:$0xff]
        %v1108 = vld [vmem:[%s263 + $0x2c8] sm:$0xff]
        %v1109 = vld [vmem:[%s263 + $0x2d0] sm:$0xff]
        %v1110 = vld [vmem:[%s263 + $0x2d8] sm:$0xff]
        %v1111 = vld [vmem:[%s263 + $0x2e0] sm:$0xff]
        %v1112 = vld [vmem:[%s263 + $0x2e8] sm:$0xff]
        %v1113 = vld [vmem:[%s263 + $0x2f0] sm:$0xff]
        %v1114 = vld [vmem:[%s263 + $0x2f8] sm:$0xff]
        %v1115 = vld [vmem:[%s263 + $0x300] sm:$0xff]
        %v1116 = vld [vmem:[%s263 + $0x308] sm:$0xff]
        %v1117 = vld [vmem:[%s263 + $0x310] sm:$0xff]
        %v1118 = vld [vmem:[%s263 + $0x318] sm:$0xff]
        %v1119 = vld [vmem:[%s263 + $0x320] sm:$0xff]
        %v1120 = vld [vmem:[%s263 + $0x328] sm:$0xff]
        %v1121 = vld [vmem:[%s263 + $0x330] sm:$0xff]
        %v1122 = vld [vmem:[%s263 + $0x338] sm:$0xff]
        %v1123 = vld [vmem:[%s263 + $0x340] sm:$0xff]
        %v1124 = vld [vmem:[%s263 + $0x348] sm:$0xff]
        %v1125 = vld [vmem:[%s263 + $0x350] sm:$0xff]
        %v1126 = vld [vmem:[%s263 + $0x358] sm:$0xff]
        %v1127 = vld [vmem:[%s263 + $0x360] sm:$0xff]
        %v1128 = vld [vmem:[%s263 + $0x368] sm:$0xff]
        %v1129 = vld [vmem:[%s263 + $0x370] sm:$0xff]
        %v1130 = vld [vmem:[%s263 + $0x378] sm:$0xff]
        %v1131 = vld [vmem:[%s263 + $0x380] sm:$0xff]
        %v1132 = vld [vmem:[%s263 + $0x388] sm:$0xff]
        %v1133 = vld [vmem:[%s263 + $0x390] sm:$0xff]
        %v1134 = vld [vmem:[%s263 + $0x398] sm:$0xff]
        %v1135 = vld [vmem:[%s263 + $0x3a0] sm:$0xff]
        %v1136 = vld [vmem:[%s263 + $0x3a8] sm:$0xff]
        %v1137 = vld [vmem:[%s263 + $0x3b0] sm:$0xff]
        %v1138 = vld [vmem:[%s263 + $0x3b8] sm:$0xff]
        %v1139 = vld [vmem:[%s263 + $0x3c0] sm:$0xff]
        %v1140 = vld [vmem:[%s263 + $0x3c8] sm:$0xff]
        %v1141 = vld [vmem:[%s263 + $0x3d0] sm:$0xff]
        %v1142 = vld [vmem:[%s263 + $0x3d8] sm:$0xff]
        %v1143 = vld [vmem:[%s263 + $0x3e0] sm:$0xff]
        %v1144 = vld [vmem:[%s263 + $0x3e8] sm:$0xff]
        %v1145 = vld [vmem:[%s263 + $0x3f0] sm:$0xff]
        %v1146 = vld [vmem:[%s263 + $0x3f8] sm:$0xff]
        %v1147 = vpack.c.bf16 %v1023, %v1019
        %v1148 = vpack.c.bf16 %v1024, %v1020
        %v1149 = vpack.c.bf16 %v1025, %v1021
        %v1150 = vpack.c.bf16 %v1026, %v1022
        %v1151 = vpack.c.bf16 %v1031, %v1027
        %v1152 = vpack.c.bf16 %v1032, %v1028
        %v1153 = vpack.c.bf16 %v1033, %v1029
        %v1154 = vpack.c.bf16 %v1034, %v1030
        %v1155 = vpack.c.bf16 %v1039, %v1035
        %v1156 = vpack.c.bf16 %v1040, %v1036
        %v1157 = vpack.c.bf16 %v1041, %v1037
        %v1158 = vpack.c.bf16 %v1042, %v1038
        %v1159 = vpack.c.bf16 %v1047, %v1043
        %v1160 = vpack.c.bf16 %v1048, %v1044
        %v1161 = vpack.c.bf16 %v1049, %v1045
        %v1162 = vpack.c.bf16 %v1050, %v1046
        %v1163 = vpack.c.bf16 %v1055, %v1051
        %v1164 = vpack.c.bf16 %v1056, %v1052
        %v1165 = vpack.c.bf16 %v1057, %v1053
        %v1166 = vpack.c.bf16 %v1058, %v1054
        %v1167 = vpack.c.bf16 %v1063, %v1059
        %v1168 = vpack.c.bf16 %v1064, %v1060
        %v1169 = vpack.c.bf16 %v1065, %v1061
        %v1170 = vpack.c.bf16 %v1066, %v1062
        %v1171 = vpack.c.bf16 %v1071, %v1067
        %v1172 = vpack.c.bf16 %v1072, %v1068
        %v1173 = vpack.c.bf16 %v1073, %v1069
        %v1174 = vpack.c.bf16 %v1074, %v1070
        %v1175 = vpack.c.bf16 %v1079, %v1075
        %v1176 = vpack.c.bf16 %v1080, %v1076
        %v1177 = vpack.c.bf16 %v1081, %v1077
        %v1178 = vpack.c.bf16 %v1082, %v1078
        %v1179 = vpack.c.bf16 %v1087, %v1083
        %v1180 = vpack.c.bf16 %v1088, %v1084
        %v1181 = vpack.c.bf16 %v1089, %v1085
        %v1182 = vpack.c.bf16 %v1090, %v1086
        %v1183 = vpack.c.bf16 %v1095, %v1091
        %v1184 = vpack.c.bf16 %v1096, %v1092
        %v1185 = vpack.c.bf16 %v1097, %v1093
        %v1186 = vpack.c.bf16 %v1098, %v1094
        %v1187 = vpack.c.bf16 %v1103, %v1099
        %v1188 = vpack.c.bf16 %v1104, %v1100
        %v1189 = vpack.c.bf16 %v1105, %v1101
        %v1190 = vpack.c.bf16 %v1106, %v1102
        %v1191 = vpack.c.bf16 %v1111, %v1107
        %v1192 = vpack.c.bf16 %v1112, %v1108
        %v1193 = vpack.c.bf16 %v1113, %v1109
        %v1194 = vpack.c.bf16 %v1114, %v1110
        %v1195 = vpack.c.bf16 %v1119, %v1115
        %v1196 = vpack.c.bf16 %v1120, %v1116
        %v1197 = vpack.c.bf16 %v1121, %v1117
        %v1198 = vpack.c.bf16 %v1122, %v1118
        %v1199 = vpack.c.bf16 %v1127, %v1123
        %v1200 = vpack.c.bf16 %v1128, %v1124
        %v1201 = vpack.c.bf16 %v1129, %v1125
        %v1202 = vpack.c.bf16 %v1130, %v1126
        %v1203 = vpack.c.bf16 %v1135, %v1131
        %v1204 = vpack.c.bf16 %v1136, %v1132
        %v1205 = vpack.c.bf16 %v1137, %v1133
        %v1206 = vpack.c.bf16 %v1138, %v1134
        %v1207 = vpack.c.bf16 %v1143, %v1139
        %v1208 = vpack.c.bf16 %v1144, %v1140
        %v1209 = vpack.c.bf16 %v1145, %v1141
        %v1210 = vpack.c.bf16 %v1146, %v1142
        %1211 = vmatprep.subr.bf16.mxu0 0
        %1212 = vmatpush1.bf16.msra.mxu0 %v962
        %1213 = vmatprep.subr.bf16.mxu0 0
        %1214 = vmatpush1.bf16.msra.mxu0 %v961
        %1215 = vmatprep.subr.bf16.mxu0 0
        %1216 = vmatpush1.bf16.msra.mxu0 %v960
        %1217 = vmatprep.subr.bf16.mxu0 0
        %1218 = vmatpush1.bf16.msra.mxu0 %v959
        %1219 = vmatprep.subr.bf16.mxu0 0
        %1220 = vmatpush1.bf16.msra.mxu0 %v958
        %1221 = vmatprep.subr.bf16.mxu0 0
        %1222 = vmatpush1.bf16.msra.mxu0 %v957
        %1223 = vmatprep.subr.bf16.mxu0 0
        %1224 = vmatpush1.bf16.msra.mxu0 %v956
        %1225 = vmatprep.subr.bf16.mxu0 0
        %1226 = vmatpush1.bf16.msra.mxu0 %v955
        %1227 = vmatprep.subr.bf16.mxu0 0
        %1228 = vmatpush2.bf16.msra.mxu0 %v970
        %1229 = vmatprep.subr.bf16.mxu0 0
        %1230 = vmatpush2.bf16.msra.mxu0 %v969
        %1231 = vmatprep.subr.bf16.mxu0 0
        %1232 = vmatpush2.bf16.msra.mxu0 %v968
        %1233 = vmatprep.subr.bf16.mxu0 0
        %1234 = vmatpush2.bf16.msra.mxu0 %v967
        %1235 = vmatprep.subr.bf16.mxu0 0
        %1236 = vmatpush2.bf16.msra.mxu0 %v966
        %1237 = vmatprep.subr.bf16.mxu0 0
        %1238 = vmatpush2.bf16.msra.mxu0 %v965
        %1239 = vmatprep.subr.bf16.mxu0 0
        %1240 = vmatpush2.bf16.msra.mxu0 %v964
        %1241 = vmatprep.subr.bf16.mxu0 0
        %1242 = vmatpush2.bf16.msra.mxu0 %v963
        %1243 = vmatprep.mubr.bf16.mxu0 %v1148
        %1244 = vmatmul.mubr.bf16.gmra.mxu0 %v1147
        %v1245 = vpop.f32.mrf.mxu0
        %v1246 = vadd.f32 0.0, %v1245
        %v1247 = vpop.f32.mrf.mxu0
        %v1248 = vpop.f32.mrf.mxu0
        %v1249 = vadd.f32 0.0, %v1248
        %v1250 = vpop.f32.mrf.mxu0
        %1251 = vmatprep.mubr.bf16.mxu0 %v1152
        %1252 = vmatmul.mubr.bf16.gmra.mxu0 %v1151
        %v1253 = vpop.f32.mrf.mxu0
        %v1254 = vadd.f32 0.0, %v1253
        %v1255 = vpop.f32.mrf.mxu0
        %v1256 = vpop.f32.mrf.mxu0
        %v1257 = vadd.f32 0.0, %v1256
        %v1258 = vpop.f32.mrf.mxu0
        %1259 = vmatprep.mubr.bf16.mxu0 %v1156
        %1260 = vmatmul.mubr.bf16.gmra.mxu0 %v1155
        %v1261 = vpop.f32.mrf.mxu0
        %v1262 = vadd.f32 0.0, %v1261
        %v1263 = vpop.f32.mrf.mxu0
        %v1264 = vpop.f32.mrf.mxu0
        %v1265 = vadd.f32 0.0, %v1264
        %v1266 = vpop.f32.mrf.mxu0
        %1267 = vmatprep.mubr.bf16.mxu0 %v1160
        %1268 = vmatmul.mubr.bf16.gmra.mxu0 %v1159
        %v1269 = vpop.f32.mrf.mxu0
        %v1270 = vadd.f32 0.0, %v1269
        %v1271 = vpop.f32.mrf.mxu0
        %v1272 = vpop.f32.mrf.mxu0
        %v1273 = vadd.f32 0.0, %v1272
        %v1274 = vpop.f32.mrf.mxu0
        %1275 = vmatprep.mubr.bf16.mxu0 %v1164
        %1276 = vmatmul.mubr.bf16.gmra.mxu0 %v1163
        %v1277 = vpop.f32.mrf.mxu0
        %v1278 = vadd.f32 0.0, %v1277
        %v1279 = vpop.f32.mrf.mxu0
        %v1280 = vpop.f32.mrf.mxu0
        %v1281 = vadd.f32 0.0, %v1280
        %v1282 = vpop.f32.mrf.mxu0
        %1283 = vmatprep.mubr.bf16.mxu0 %v1168
        %1284 = vmatmul.mubr.bf16.gmra.mxu0 %v1167
        %v1285 = vpop.f32.mrf.mxu0
        %v1286 = vadd.f32 0.0, %v1285
        %v1287 = vpop.f32.mrf.mxu0
        %v1288 = vpop.f32.mrf.mxu0
        %v1289 = vadd.f32 0.0, %v1288
        %v1290 = vpop.f32.mrf.mxu0
        %1291 = vmatprep.mubr.bf16.mxu0 %v1172
        %1292 = vmatmul.mubr.bf16.gmra.mxu0 %v1171
        %v1293 = vpop.f32.mrf.mxu0
        %v1294 = vadd.f32 0.0, %v1293
        %v1295 = vpop.f32.mrf.mxu0
        %v1296 = vpop.f32.mrf.mxu0
        %v1297 = vadd.f32 0.0, %v1296
        %v1298 = vpop.f32.mrf.mxu0
        %1299 = vmatprep.mubr.bf16.mxu0 %v1176
        %1300 = vmatmul.mubr.bf16.gmra.mxu0 %v1175
        %v1301 = vpop.f32.mrf.mxu0
        %v1302 = vadd.f32 0.0, %v1301
        %v1303 = vpop.f32.mrf.mxu0
        %v1304 = vpop.f32.mrf.mxu0
        %v1305 = vadd.f32 0.0, %v1304
        %v1306 = vpop.f32.mrf.mxu0
        %1307 = vmatprep.mubr.bf16.mxu0 %v1180
        %1308 = vmatmul.mubr.bf16.gmra.mxu0 %v1179
        %v1309 = vpop.f32.mrf.mxu0
        %v1310 = vadd.f32 0.0, %v1309
        %v1311 = vpop.f32.mrf.mxu0
        %v1312 = vpop.f32.mrf.mxu0
        %v1313 = vadd.f32 0.0, %v1312
        %v1314 = vpop.f32.mrf.mxu0
        %1315 = vmatprep.mubr.bf16.mxu0 %v1184
        %1316 = vmatmul.mubr.bf16.gmra.mxu0 %v1183
        %v1317 = vpop.f32.mrf.mxu0
        %v1318 = vadd.f32 0.0, %v1317
        %v1319 = vpop.f32.mrf.mxu0
        %v1320 = vpop.f32.mrf.mxu0
        %v1321 = vadd.f32 0.0, %v1320
        %v1322 = vpop.f32.mrf.mxu0
        %1323 = vmatprep.mubr.bf16.mxu0 %v1188
        %1324 = vmatmul.mubr.bf16.gmra.mxu0 %v1187
        %v1325 = vpop.f32.mrf.mxu0
        %v1326 = vadd.f32 0.0, %v1325
        %v1327 = vpop.f32.mrf.mxu0
        %v1328 = vpop.f32.mrf.mxu0
        %v1329 = vadd.f32 0.0, %v1328
        %v1330 = vpop.f32.mrf.mxu0
        %1331 = vmatprep.mubr.bf16.mxu0 %v1192
        %1332 = vmatmul.mubr.bf16.gmra.mxu0 %v1191
        %v1333 = vpop.f32.mrf.mxu0
        %v1334 = vadd.f32 0.0, %v1333
        %v1335 = vpop.f32.mrf.mxu0
        %v1336 = vpop.f32.mrf.mxu0
        %v1337 = vadd.f32 0.0, %v1336
        %v1338 = vpop.f32.mrf.mxu0
        %1339 = vmatprep.mubr.bf16.mxu0 %v1196
        %1340 = vmatmul.mubr.bf16.gmra.mxu0 %v1195
        %v1341 = vpop.f32.mrf.mxu0
        %v1342 = vadd.f32 0.0, %v1341
        %v1343 = vpop.f32.mrf.mxu0
        %v1344 = vpop.f32.mrf.mxu0
        %v1345 = vadd.f32 0.0, %v1344
        %v1346 = vpop.f32.mrf.mxu0
        %1347 = vmatprep.mubr.bf16.mxu0 %v1200
        %1348 = vmatmul.mubr.bf16.gmra.mxu0 %v1199
        %v1349 = vpop.f32.mrf.mxu0
        %v1350 = vadd.f32 0.0, %v1349
        %v1351 = vpop.f32.mrf.mxu0
        %v1352 = vpop.f32.mrf.mxu0
        %v1353 = vadd.f32 0.0, %v1352
        %v1354 = vpop.f32.mrf.mxu0
        %1355 = vmatprep.mubr.bf16.mxu0 %v1204
        %1356 = vmatmul.mubr.bf16.gmra.mxu0 %v1203
        %v1357 = vpop.f32.mrf.mxu0
        %v1358 = vadd.f32 0.0, %v1357
        %v1359 = vpop.f32.mrf.mxu0
        %v1360 = vpop.f32.mrf.mxu0
        %v1361 = vadd.f32 0.0, %v1360
        %v1362 = vpop.f32.mrf.mxu0
        %1363 = vmatprep.mubr.bf16.mxu0 %v1208
        %1364 = vmatmul.mubr.bf16.gmra.mxu0 %v1207
        %v1365 = vpop.f32.mrf.mxu0
        %v1366 = vadd.f32 0.0, %v1365
        %v1367 = vpop.f32.mrf.mxu0
        %v1368 = vpop.f32.mrf.mxu0
        %v1369 = vadd.f32 0.0, %v1368
        %v1370 = vpop.f32.mrf.mxu0
        %1371 = vdwg.mxu0
        %1372 = vmatprep.subr.bf16.mxu0 0
        %1373 = vmatpush1.bf16.msra.mxu0 %v978
        %1374 = vmatprep.subr.bf16.mxu0 0
        %1375 = vmatpush1.bf16.msra.mxu0 %v977
        %1376 = vmatprep.subr.bf16.mxu0 0
        %1377 = vmatpush1.bf16.msra.mxu0 %v976
        %1378 = vmatprep.subr.bf16.mxu0 0
        %1379 = vmatpush1.bf16.msra.mxu0 %v975
        %1380 = vmatprep.subr.bf16.mxu0 0
        %1381 = vmatpush1.bf16.msra.mxu0 %v974
        %1382 = vmatprep.subr.bf16.mxu0 0
        %1383 = vmatpush1.bf16.msra.mxu0 %v973
        %1384 = vmatprep.subr.bf16.mxu0 0
        %1385 = vmatpush1.bf16.msra.mxu0 %v972
        %1386 = vmatprep.subr.bf16.mxu0 0
        %1387 = vmatpush1.bf16.msra.mxu0 %v971
        %1388 = vmatprep.subr.bf16.mxu0 0
        %1389 = vmatpush2.bf16.msra.mxu0 %v986
        %1390 = vmatprep.subr.bf16.mxu0 0
        %1391 = vmatpush2.bf16.msra.mxu0 %v985
        %1392 = vmatprep.subr.bf16.mxu0 0
        %1393 = vmatpush2.bf16.msra.mxu0 %v984
        %1394 = vmatprep.subr.bf16.mxu0 0
        %1395 = vmatpush2.bf16.msra.mxu0 %v983
        %1396 = vmatprep.subr.bf16.mxu0 0
        %1397 = vmatpush2.bf16.msra.mxu0 %v982
        %1398 = vmatprep.subr.bf16.mxu0 0
        %1399 = vmatpush2.bf16.msra.mxu0 %v981
        %1400 = vmatprep.subr.bf16.mxu0 0
        %1401 = vmatpush2.bf16.msra.mxu0 %v980
        %1402 = vmatprep.subr.bf16.mxu0 0
        %1403 = vmatpush2.bf16.msra.mxu0 %v979
        %1404 = vmatprep.mubr.bf16.mxu0 %v1150
        %1405 = vmatmul.mubr.bf16.gmra.mxu0 %v1149
        %v1406 = vpop.f32.mrf.mxu0
        %v1407 = vadd.f32 %v1246, %v1406
        %v1408 = vpop.f32.mrf.mxu0
        %v1409 = vpop.f32.mrf.mxu0
        %v1410 = vadd.f32 %v1249, %v1409
        %v1411 = vpop.f32.mrf.mxu0
        %1412 = vmatprep.mubr.bf16.mxu0 %v1154
        %1413 = vmatmul.mubr.bf16.gmra.mxu0 %v1153
        %v1414 = vpop.f32.mrf.mxu0
        %v1415 = vadd.f32 %v1254, %v1414
        %v1416 = vpop.f32.mrf.mxu0
        %v1417 = vpop.f32.mrf.mxu0
        %v1418 = vadd.f32 %v1257, %v1417
        %v1419 = vpop.f32.mrf.mxu0
        %1420 = vmatprep.mubr.bf16.mxu0 %v1158
        %1421 = vmatmul.mubr.bf16.gmra.mxu0 %v1157
        %v1422 = vpop.f32.mrf.mxu0
        %v1423 = vadd.f32 %v1262, %v1422
        %v1424 = vpop.f32.mrf.mxu0
        %v1425 = vpop.f32.mrf.mxu0
        %v1426 = vadd.f32 %v1265, %v1425
        %v1427 = vpop.f32.mrf.mxu0
        %1428 = vmatprep.mubr.bf16.mxu0 %v1162
        %1429 = vmatmul.mubr.bf16.gmra.mxu0 %v1161
        %v1430 = vpop.f32.mrf.mxu0
        %v1431 = vadd.f32 %v1270, %v1430
        %v1432 = vpop.f32.mrf.mxu0
        %v1433 = vpop.f32.mrf.mxu0
        %v1434 = vadd.f32 %v1273, %v1433
        %v1435 = vpop.f32.mrf.mxu0
        %1436 = vmatprep.mubr.bf16.mxu0 %v1166
        %1437 = vmatmul.mubr.bf16.gmra.mxu0 %v1165
        %v1438 = vpop.f32.mrf.mxu0
        %v1439 = vadd.f32 %v1278, %v1438
        %v1440 = vpop.f32.mrf.mxu0
        %v1441 = vpop.f32.mrf.mxu0
        %v1442 = vadd.f32 %v1281, %v1441
        %v1443 = vpop.f32.mrf.mxu0
        %1444 = vmatprep.mubr.bf16.mxu0 %v1170
        %1445 = vmatmul.mubr.bf16.gmra.mxu0 %v1169
        %v1446 = vpop.f32.mrf.mxu0
        %v1447 = vadd.f32 %v1286, %v1446
        %v1448 = vpop.f32.mrf.mxu0
        %v1449 = vpop.f32.mrf.mxu0
        %v1450 = vadd.f32 %v1289, %v1449
        %v1451 = vpop.f32.mrf.mxu0
        %1452 = vmatprep.mubr.bf16.mxu0 %v1174
        %1453 = vmatmul.mubr.bf16.gmra.mxu0 %v1173
        %v1454 = vpop.f32.mrf.mxu0
        %v1455 = vadd.f32 %v1294, %v1454
        %v1456 = vpop.f32.mrf.mxu0
        %v1457 = vpop.f32.mrf.mxu0
        %v1458 = vadd.f32 %v1297, %v1457
        %v1459 = vpop.f32.mrf.mxu0
        %1460 = vmatprep.mubr.bf16.mxu0 %v1178
        %1461 = vmatmul.mubr.bf16.gmra.mxu0 %v1177
        %v1462 = vpop.f32.mrf.mxu0
        %v1463 = vadd.f32 %v1302, %v1462
        %v1464 = vpop.f32.mrf.mxu0
        %v1465 = vpop.f32.mrf.mxu0
        %v1466 = vadd.f32 %v1305, %v1465
        %v1467 = vpop.f32.mrf.mxu0
        %1468 = vmatprep.mubr.bf16.mxu0 %v1182
        %1469 = vmatmul.mubr.bf16.gmra.mxu0 %v1181
        %v1470 = vpop.f32.mrf.mxu0
        %v1471 = vadd.f32 %v1310, %v1470
        %v1472 = vpop.f32.mrf.mxu0
        %v1473 = vpop.f32.mrf.mxu0
        %v1474 = vadd.f32 %v1313, %v1473
        %v1475 = vpop.f32.mrf.mxu0
        %1476 = vmatprep.mubr.bf16.mxu0 %v1186
        %1477 = vmatmul.mubr.bf16.gmra.mxu0 %v1185
        %v1478 = vpop.f32.mrf.mxu0
        %v1479 = vadd.f32 %v1318, %v1478
        %v1480 = vpop.f32.mrf.mxu0
        %v1481 = vpop.f32.mrf.mxu0
        %v1482 = vadd.f32 %v1321, %v1481
        %v1483 = vpop.f32.mrf.mxu0
        %1484 = vmatprep.mubr.bf16.mxu0 %v1190
        %1485 = vmatmul.mubr.bf16.gmra.mxu0 %v1189
        %v1486 = vpop.f32.mrf.mxu0
        %v1487 = vadd.f32 %v1326, %v1486
        %v1488 = vpop.f32.mrf.mxu0
        %v1489 = vpop.f32.mrf.mxu0
        %v1490 = vadd.f32 %v1329, %v1489
        %v1491 = vpop.f32.mrf.mxu0
        %1492 = vmatprep.mubr.bf16.mxu0 %v1194
        %1493 = vmatmul.mubr.bf16.gmra.mxu0 %v1193
        %v1494 = vpop.f32.mrf.mxu0
        %v1495 = vadd.f32 %v1334, %v1494
        %v1496 = vpop.f32.mrf.mxu0
        %v1497 = vpop.f32.mrf.mxu0
        %v1498 = vadd.f32 %v1337, %v1497
        %v1499 = vpop.f32.mrf.mxu0
        %1500 = vmatprep.mubr.bf16.mxu0 %v1198
        %1501 = vmatmul.mubr.bf16.gmra.mxu0 %v1197
        %v1502 = vpop.f32.mrf.mxu0
        %v1503 = vadd.f32 %v1342, %v1502
        %v1504 = vpop.f32.mrf.mxu0
        %v1505 = vpop.f32.mrf.mxu0
        %v1506 = vadd.f32 %v1345, %v1505
        %v1507 = vpop.f32.mrf.mxu0
        %1508 = vmatprep.mubr.bf16.mxu0 %v1202
        %1509 = vmatmul.mubr.bf16.gmra.mxu0 %v1201
        %v1510 = vpop.f32.mrf.mxu0
        %v1511 = vadd.f32 %v1350, %v1510
        %v1512 = vpop.f32.mrf.mxu0
        %v1513 = vpop.f32.mrf.mxu0
        %v1514 = vadd.f32 %v1353, %v1513
        %v1515 = vpop.f32.mrf.mxu0
        %1516 = vmatprep.mubr.bf16.mxu0 %v1206
        %1517 = vmatmul.mubr.bf16.gmra.mxu0 %v1205
        %v1518 = vpop.f32.mrf.mxu0
        %v1519 = vadd.f32 %v1358, %v1518
        %v1520 = vpop.f32.mrf.mxu0
        %v1521 = vpop.f32.mrf.mxu0
        %v1522 = vadd.f32 %v1361, %v1521
        %v1523 = vpop.f32.mrf.mxu0
        %1524 = vmatprep.mubr.bf16.mxu0 %v1210
        %1525 = vmatmul.mubr.bf16.gmra.mxu0 %v1209
        %v1526 = vpop.f32.mrf.mxu0
        %v1527 = vadd.f32 %v1366, %v1526
        %v1528 = vpop.f32.mrf.mxu0
        %v1529 = vpop.f32.mrf.mxu0
        %v1530 = vadd.f32 %v1369, %v1529
        %v1531 = vpop.f32.mrf.mxu0
        %1532 = vdwg.mxu0
        %v1533 = vadd.f32 %v987, %v1407
        %v1534 = vadd.f32 %v988, %v1410
        %v1535 = vadd.f32 %v989, %v1415
        %v1536 = vadd.f32 %v990, %v1418
        %v1537 = vadd.f32 %v991, %v1423
        %v1538 = vadd.f32 %v992, %v1426
        %v1539 = vadd.f32 %v993, %v1431
        %v1540 = vadd.f32 %v994, %v1434
        %v1541 = vadd.f32 %v995, %v1439
        %v1542 = vadd.f32 %v996, %v1442
        %v1543 = vadd.f32 %v997, %v1447
        %v1544 = vadd.f32 %v998, %v1450
        %v1545 = vadd.f32 %v999, %v1455
        %v1546 = vadd.f32 %v1000, %v1458
        %v1547 = vadd.f32 %v1001, %v1463
        %v1548 = vadd.f32 %v1002, %v1466
        %v1549 = vadd.f32 %v1003, %v1471
        %v1550 = vadd.f32 %v1004, %v1474
        %v1551 = vadd.f32 %v1005, %v1479
        %v1552 = vadd.f32 %v1006, %v1482
        %v1553 = vadd.f32 %v1007, %v1487
        %v1554 = vadd.f32 %v1008, %v1490
        %v1555 = vadd.f32 %v1009, %v1495
        %v1556 = vadd.f32 %v1010, %v1498
        %v1557 = vadd.f32 %v1011, %v1503
        %v1558 = vadd.f32 %v1012, %v1506
        %v1559 = vadd.f32 %v1013, %v1511
        %v1560 = vadd.f32 %v1014, %v1514
        %v1561 = vadd.f32 %v1015, %v1519
        %v1562 = vadd.f32 %v1016, %v1522
        %v1563 = vadd.f32 %v1017, %v1527
        %v1564 = vadd.f32 %v1018, %v1530
        %1565 = vst [vmem:[%s297] sm:$0xff] %v1533
        %1566 = vst [vmem:[%s297 + $0x8] sm:$0xff] %v1534
        %1567 = vst [vmem:[%s297 + $0x10] sm:$0xff] %v1535
        %1568 = vst [vmem:[%s297 + $0x18] sm:$0xff] %v1536
        %1569 = vst [vmem:[%s297 + $0x20] sm:$0xff] %v1537
        %1570 = vst [vmem:[%s297 + $0x28] sm:$0xff] %v1538
        %1571 = vst [vmem:[%s297 + $0x30] sm:$0xff] %v1539
        %1572 = vst [vmem:[%s297 + $0x38] sm:$0xff] %v1540
        %1573 = vst [vmem:[%s297 + $0x40] sm:$0xff] %v1541
        %1574 = vst [vmem:[%s297 + $0x48] sm:$0xff] %v1542
        %1575 = vst [vmem:[%s297 + $0x50] sm:$0xff] %v1543
        %1576 = vst [vmem:[%s297 + $0x58] sm:$0xff] %v1544
        %1577 = vst [vmem:[%s297 + $0x60] sm:$0xff] %v1545
        %1578 = vst [vmem:[%s297 + $0x68] sm:$0xff] %v1546
        %1579 = vst [vmem:[%s297 + $0x70] sm:$0xff] %v1547
        %1580 = vst [vmem:[%s297 + $0x78] sm:$0xff] %v1548
        %1581 = vst [vmem:[%s297 + $0x80] sm:$0xff] %v1549
        %1582 = vst [vmem:[%s297 + $0x88] sm:$0xff] %v1550
        %1583 = vst [vmem:[%s297 + $0x90] sm:$0xff] %v1551
        %1584 = vst [vmem:[%s297 + $0x98] sm:$0xff] %v1552
        %1585 = vst [vmem:[%s297 + $0xa0] sm:$0xff] %v1553
        %1586 = vst [vmem:[%s297 + $0xa8] sm:$0xff] %v1554
        %1587 = vst [vmem:[%s297 + $0xb0] sm:$0xff] %v1555
        %1588 = vst [vmem:[%s297 + $0xb8] sm:$0xff] %v1556
        %1589 = vst [vmem:[%s297 + $0xc0] sm:$0xff] %v1557
        %1590 = vst [vmem:[%s297 + $0xc8] sm:$0xff] %v1558
        %1591 = vst [vmem:[%s297 + $0xd0] sm:$0xff] %v1559
        %1592 = vst [vmem:[%s297 + $0xd8] sm:$0xff] %v1560
        %1593 = vst [vmem:[%s297 + $0xe0] sm:$0xff] %v1561
        %1594 = vst [vmem:[%s297 + $0xe8] sm:$0xff] %v1562
        %1595 = vst [vmem:[%s297 + $0xf0] sm:$0xff] %v1563
        %1596 = vst [vmem:[%s297 + $0xf8] sm:$0xff] %v1564
        // Predicated region
        $region57: #{tpu_custom_call.1} parent=39 // pred_check
          %p1597 = pneg %p303
        $region58: #{tpu_custom_call.1} parent=39 // pred_check_branch
          %1599 = sbr.rel (%p1597) target = $region60
        $region59: #{tpu_custom_call.1} parent=39 // pred_region
          %v1600 = vld [vmem:[%s297] sm:$0xff]
          %v1601 = vld [vmem:[%s297 + $0x8] sm:$0xff]
          %v1602 = vld [vmem:[%s297 + $0x10] sm:$0xff]
          %v1603 = vld [vmem:[%s297 + $0x18] sm:$0xff]
          %v1604 = vld [vmem:[%s297 + $0x20] sm:$0xff]
          %v1605 = vld [vmem:[%s297 + $0x28] sm:$0xff]
          %v1606 = vld [vmem:[%s297 + $0x30] sm:$0xff]
          %v1607 = vld [vmem:[%s297 + $0x38] sm:$0xff]
          %v1608 = vld [vmem:[%s297 + $0x40] sm:$0xff]
          %v1609 = vld [vmem:[%s297 + $0x48] sm:$0xff]
          %v1610 = vld [vmem:[%s297 + $0x50] sm:$0xff]
          %v1611 = vld [vmem:[%s297 + $0x58] sm:$0xff]
          %v1612 = vld [vmem:[%s297 + $0x60] sm:$0xff]
          %v1613 = vld [vmem:[%s297 + $0x68] sm:$0xff]
          %v1614 = vld [vmem:[%s297 + $0x70] sm:$0xff]
          %v1615 = vld [vmem:[%s297 + $0x78] sm:$0xff]
          %v1616 = vld [vmem:[%s297 + $0x80] sm:$0xff]
          %v1617 = vld [vmem:[%s297 + $0x88] sm:$0xff]
          %v1618 = vld [vmem:[%s297 + $0x90] sm:$0xff]
          %v1619 = vld [vmem:[%s297 + $0x98] sm:$0xff]
          %v1620 = vld [vmem:[%s297 + $0xa0] sm:$0xff]
          %v1621 = vld [vmem:[%s297 + $0xa8] sm:$0xff]
          %v1622 = vld [vmem:[%s297 + $0xb0] sm:$0xff]
          %v1623 = vld [vmem:[%s297 + $0xb8] sm:$0xff]
          %v1624 = vld [vmem:[%s297 + $0xc0] sm:$0xff]
          %v1625 = vld [vmem:[%s297 + $0xc8] sm:$0xff]
          %v1626 = vld [vmem:[%s297 + $0xd0] sm:$0xff]
          %v1627 = vld [vmem:[%s297 + $0xd8] sm:$0xff]
          %v1628 = vld [vmem:[%s297 + $0xe0] sm:$0xff]
          %v1629 = vld [vmem:[%s297 + $0xe8] sm:$0xff]
          %v1630 = vld [vmem:[%s297 + $0xf0] sm:$0xff]
          %v1631 = vld [vmem:[%s297 + $0xf8] sm:$0xff]
          %s1632 = sld [smem:[#allocation2]]
          %vm1633 = vcmp.gt.f32.partialorder %v1600, 0.0
          %vm1634 = vcmp.gt.f32.partialorder %v1601, 0.0
          %vm1635 = vcmp.gt.f32.partialorder %v1602, 0.0
          %vm1636 = vcmp.gt.f32.partialorder %v1603, 0.0
          %vm1637 = vcmp.gt.f32.partialorder %v1604, 0.0
          %vm1638 = vcmp.gt.f32.partialorder %v1605, 0.0
          %vm1639 = vcmp.gt.f32.partialorder %v1606, 0.0
          %vm1640 = vcmp.gt.f32.partialorder %v1607, 0.0
          %vm1641 = vcmp.gt.f32.partialorder %v1608, 0.0
          %vm1642 = vcmp.gt.f32.partialorder %v1609, 0.0
          %vm1643 = vcmp.gt.f32.partialorder %v1610, 0.0
          %vm1644 = vcmp.gt.f32.partialorder %v1611, 0.0
          %vm1645 = vcmp.gt.f32.partialorder %v1612, 0.0
          %vm1646 = vcmp.gt.f32.partialorder %v1613, 0.0
          %vm1647 = vcmp.gt.f32.partialorder %v1614, 0.0
          %vm1648 = vcmp.gt.f32.partialorder %v1615, 0.0
          %vm1649 = vcmp.gt.f32.partialorder %v1616, 0.0
          %vm1650 = vcmp.gt.f32.partialorder %v1617, 0.0
          %vm1651 = vcmp.gt.f32.partialorder %v1618, 0.0
          %vm1652 = vcmp.gt.f32.partialorder %v1619, 0.0
          %vm1653 = vcmp.gt.f32.partialorder %v1620, 0.0
          %vm1654 = vcmp.gt.f32.partialorder %v1621, 0.0
          %vm1655 = vcmp.gt.f32.partialorder %v1622, 0.0
          %vm1656 = vcmp.gt.f32.partialorder %v1623, 0.0
          %vm1657 = vcmp.gt.f32.partialorder %v1624, 0.0
          %vm1658 = vcmp.gt.f32.partialorder %v1625, 0.0
          %vm1659 = vcmp.gt.f32.partialorder %v1626, 0.0
          %vm1660 = vcmp.gt.f32.partialorder %v1627, 0.0
          %vm1661 = vcmp.gt.f32.partialorder %v1628, 0.0
          %vm1662 = vcmp.gt.f32.partialorder %v1629, 0.0
          %vm1663 = vcmp.gt.f32.partialorder %v1630, 0.0
          %vm1664 = vcmp.gt.f32.partialorder %v1631, 0.0
          %v1665 = vstv %s1632
          %v1666 = vmul.f32 %v1665, %v1600
          %v1667 = vmul.f32 %v1665, %v1601
          %v1668 = vmul.f32 %v1665, %v1602
          %v1669 = vmul.f32 %v1665, %v1603
          %v1670 = vmul.f32 %v1665, %v1604
          %v1671 = vmul.f32 %v1665, %v1605
          %v1672 = vmul.f32 %v1665, %v1606
          %v1673 = vmul.f32 %v1665, %v1607
          %v1674 = vmul.f32 %v1665, %v1608
          %v1675 = vmul.f32 %v1665, %v1609
          %v1676 = vmul.f32 %v1665, %v1610
          %v1677 = vmul.f32 %v1665, %v1611
          %v1678 = vmul.f32 %v1665, %v1612
          %v1679 = vmul.f32 %v1665, %v1613
          %v1680 = vmul.f32 %v1665, %v1614
          %v1681 = vmul.f32 %v1665, %v1615
          %v1682 = vmul.f32 %v1665, %v1616
          %v1683 = vmul.f32 %v1665, %v1617
          %v1684 = vmul.f32 %v1665, %v1618
          %v1685 = vmul.f32 %v1665, %v1619
          %v1686 = vmul.f32 %v1665, %v1620
          %v1687 = vmul.f32 %v1665, %v1621
          %v1688 = vmul.f32 %v1665, %v1622
          %v1689 = vmul.f32 %v1665, %v1623
          %v1690 = vmul.f32 %v1665, %v1624
          %v1691 = vmul.f32 %v1665, %v1625
          %v1692 = vmul.f32 %v1665, %v1626
          %v1693 = vmul.f32 %v1665, %v1627
          %v1694 = vmul.f32 %v1665, %v1628
          %v1695 = vmul.f32 %v1665, %v1629
          %v1696 = vmul.f32 %v1665, %v1630
          %v1697 = vmul.f32 %v1665, %v1631
          %v1698 = vsel %vm1633, %v1600, %v1666
          %v1699 = vsel %vm1634, %v1601, %v1667
          %v1700 = vsel %vm1635, %v1602, %v1668
          %v1701 = vsel %vm1636, %v1603, %v1669
          %v1702 = vsel %vm1637, %v1604, %v1670
          %v1703 = vsel %vm1638, %v1605, %v1671
          %v1704 = vsel %vm1639, %v1606, %v1672
          %v1705 = vsel %vm1640, %v1607, %v1673
          %v1706 = vsel %vm1641, %v1608, %v1674
          %v1707 = vsel %vm1642, %v1609, %v1675
          %v1708 = vsel %vm1643, %v1610, %v1676
          %v1709 = vsel %vm1644, %v1611, %v1677
          %v1710 = vsel %vm1645, %v1612, %v1678
          %v1711 = vsel %vm1646, %v1613, %v1679
          %v1712 = vsel %vm1647, %v1614, %v1680
          %v1713 = vsel %vm1648, %v1615, %v1681
          %v1714 = vsel %vm1649, %v1616, %v1682
          %v1715 = vsel %vm1650, %v1617, %v1683
          %v1716 = vsel %vm1651, %v1618, %v1684
          %v1717 = vsel %vm1652, %v1619, %v1685
          %v1718 = vsel %vm1653, %v1620, %v1686
          %v1719 = vsel %vm1654, %v1621, %v1687
          %v1720 = vsel %vm1655, %v1622, %v1688
          %v1721 = vsel %vm1656, %v1623, %v1689
          %v1722 = vsel %vm1657, %v1624, %v1690
          %v1723 = vsel %vm1658, %v1625, %v1691
          %v1724 = vsel %vm1659, %v1626, %v1692
          %v1725 = vsel %vm1660, %v1627, %v1693
          %v1726 = vsel %vm1661, %v1628, %v1694
          %v1727 = vsel %vm1662, %v1629, %v1695
          %v1728 = vsel %vm1663, %v1630, %v1696
          %v1729 = vsel %vm1664, %v1631, %v1697
          %1730 = vst [vmem:[%s297] sm:$0xff] %v1698
          %1731 = vst [vmem:[%s297 + $0x8] sm:$0xff] %v1699
          %1732 = vst [vmem:[%s297 + $0x10] sm:$0xff] %v1700
          %1733 = vst [vmem:[%s297 + $0x18] sm:$0xff] %v1701
          %1734 = vst [vmem:[%s297 + $0x20] sm:$0xff] %v1702
          %1735 = vst [vmem:[%s297 + $0x28] sm:$0xff] %v1703
          %1736 = vst [vmem:[%s297 + $0x30] sm:$0xff] %v1704
          %1737 = vst [vmem:[%s297 + $0x38] sm:$0xff] %v1705
          %1738 = vst [vmem:[%s297 + $0x40] sm:$0xff] %v1706
          %1739 = vst [vmem:[%s297 + $0x48] sm:$0xff] %v1707
          %1740 = vst [vmem:[%s297 + $0x50] sm:$0xff] %v1708
          %1741 = vst [vmem:[%s297 + $0x58] sm:$0xff] %v1709
          %1742 = vst [vmem:[%s297 + $0x60] sm:$0xff] %v1710
          %1743 = vst [vmem:[%s297 + $0x68] sm:$0xff] %v1711
          %1744 = vst [vmem:[%s297 + $0x70] sm:$0xff] %v1712
          %1745 = vst [vmem:[%s297 + $0x78] sm:$0xff] %v1713
          %1746 = vst [vmem:[%s297 + $0x80] sm:$0xff] %v1714
          %1747 = vst [vmem:[%s297 + $0x88] sm:$0xff] %v1715
          %1748 = vst [vmem:[%s297 + $0x90] sm:$0xff] %v1716
          %1749 = vst [vmem:[%s297 + $0x98] sm:$0xff] %v1717
          %1750 = vst [vmem:[%s297 + $0xa0] sm:$0xff] %v1718
          %1751 = vst [vmem:[%s297 + $0xa8] sm:$0xff] %v1719
          %1752 = vst [vmem:[%s297 + $0xb0] sm:$0xff] %v1720
          %1753 = vst [vmem:[%s297 + $0xb8] sm:$0xff] %v1721
          %1754 = vst [vmem:[%s297 + $0xc0] sm:$0xff] %v1722
          %1755 = vst [vmem:[%s297 + $0xc8] sm:$0xff] %v1723
          %1756 = vst [vmem:[%s297 + $0xd0] sm:$0xff] %v1724
          %1757 = vst [vmem:[%s297 + $0xd8] sm:$0xff] %v1725
          %1758 = vst [vmem:[%s297 + $0xe0] sm:$0xff] %v1726
          %1759 = vst [vmem:[%s297 + $0xe8] sm:$0xff] %v1727
          %1760 = vst [vmem:[%s297 + $0xf0] sm:$0xff] %v1728
          %1761 = vst [vmem:[%s297 + $0xf8] sm:$0xff] %v1729
        $region60: #{tpu_custom_call.1} parent=39 // pred_fallthru
          _
        %s1762 = sand.u32 %s161, 1
        %s1763 = scalar_lea.sflag [#allocation5], %s1762
        %s1764 = sand.u32 %s161, 1
        %s1765 = smul.addr %s1764, 256
        %s1766 = scalar_lea.vmem [#allocation9], %s1765
        // Predicated region
        $region61: #{tpu_custom_call.1} parent=39 // pred_check
          %p1767 = pneg %p171
        $region62: #{tpu_custom_call.1} parent=39 // pred_check_branch
          %1769 = sbr.rel (%p1767) target = $region64
        $region63: #{tpu_custom_call.1} parent=39 // pred_region
          %s1770 = smul.u32 32, %s28
          %s1772 = ssub.s32 4096, 4096
          %1773 = vsyncadd %s1763, %s1772
          %s1774 = smul.addr %s1770, 128
          %s1775 = scalar_lea.hbm %s5, %s1774
          %s1776 = sshll.u32 %s1766, 4
          %s1777 = int_to_ptr.vmem [resolvable:$true] %s1776
          %1782 = dma.vmem_to_hbm [thread:$0]  %s1777, 4096, %s1775, %s1763, 128, 128, 8
        $region64: #{tpu_custom_call.1} parent=39 // pred_fallthru
          _
      $region40: #{tpu_custom_call.1} parent=5 // pred_fallthru
        _
      %p1783 = scmp.le.s32.totalorder 2, %s19
      // Predicated region
      $region65: #{tpu_custom_call.1} parent=5 // pred_check
        %p1784 = pneg %p1783
      $region66: #{tpu_custom_call.1} parent=5 // pred_check_branch
        %1786 = sbr.rel (%p1784) target = $region68
      $region67: #{tpu_custom_call.1} parent=5 // pred_region
        %s1787 = ssub.s32 %s19, 2
        // Predicated region
        $region69: #{tpu_custom_call.1} parent=67 // pred_check
          %p1788 = pneg %p177
        $region70: #{tpu_custom_call.1} parent=67 // pred_check_branch
          %1790 = sbr.rel (%p1788) target = $region72
        $region71: #{tpu_custom_call.1} parent=67 // pred_region
          %s1791 = sand.u32 %s162, 1
          %s1792 = scalar_lea.sflag [#allocation5], %s1791
          %s1793 = sand.u32 %s162, 1
          %s1794 = smul.addr %s1793, 256
          %s1795 = scalar_lea.vmem [#allocation9], %s1794
          %1796 = dma.done %s1792, 4096
        $region72: #{tpu_custom_call.1} parent=67 // pred_fallthru
          _
      $region68: #{tpu_custom_call.1} parent=5 // pred_fallthru
        _
    $region6: #{tpu_custom_call.1} parent=1 // loop_footer
      %s23 = sadd.s32 1, %s19
    $region7: #{tpu_custom_call.1} parent=1 // loop_footer_branch
      %18 = sbr.rel target = $region3
    $region8: #{tpu_custom_call.1} parent=1 // loop_exit
      _
    %1797 = vsyncpa [#allocation4], 1
    %s1798 = scalar_lea.sflag [#allocation4], 1
    %1799 = vsyncpa %s1798, 1
    %1800 = vsyncpa [#allocation7], 1
    %1801 = vsyncpa [#allocation5], 1
    %s1802 = scalar_lea.sflag [#allocation5], 1
    %1803 = vsyncpa %s1802, 1

</llo_original>
